<compile_context>
chip_gen: v7x
topology: tpu7x:2x2x1
jax: 0.10.0
libtpu: 0.0.40
codegen_flags: <defaults>
</compile_context>

<pallas_src>
import jax
import jax.numpy as jnp
import numpy as np
from jax.experimental import pallas as pl
from jax.experimental.pallas import tpu as pltpu

MASK_TOKEN_ID = 57344  # canine_tokenizer.mask_token_id for 'google/canine-s' (U+E000)


def hangman_head_kernel(seq_ref, hg_ref, amask_ref, guess_ref,
                        w1_ref, w2_ref, b2_ref, out_ref):
    # Per-grid-step refs (bpt = batch rows handled by this step):
    #   seq_ref   (bpt, S, 768)  bf16 sequence_output
    #   hg_ref    (bpt, Hp)      f32  per-batch guess contribution + fc bias
    #   amask_ref (bpt, S)       f32  additive mask: 0 at MASK positions, -inf else
    #   guess_ref (bpt, 26)      f32  guessed letters (0/1)
    #   w1_ref    (768, Hp) bf16, w2_ref (Hp, 26) bf16, b2_ref (1, 26) f32
    #   out_ref   (bpt, 26)      f32
    bpt, S, D = seq_ref.shape
    Hp = w1_ref.shape[1]
    V = w2_ref.shape[1]

    # One big matmul with M = bpt * S rows on the MXU (f32 accumulation).
    x = seq_ref[...].reshape(bpt * S, D)
    h = jnp.dot(x, w1_ref[...], preferred_element_type=jnp.float32)        # (M, Hp)

    # Add the per-batch (guess @ W_g + b1) bias row, ReLU.
    h = h.reshape(bpt, S, Hp) + hg_ref[...].reshape(bpt, 1, Hp)
    h = jnp.maximum(h, 0.0)

    # Second matmul: (M, Hp) @ (Hp, 26), f32 accumulation.
    logits = jnp.dot(h.reshape(bpt * S, Hp).astype(jnp.bfloat16), w2_ref[...],
                     preferred_element_type=jnp.float32)                    # (M, V)
    logits = logits.reshape(bpt, S, V) + b2_ref[...].reshape(1, 1, V)

    # masked_fill(~(input_ids == mask_token_id), -inf) as an additive mask,
    # then max over the sequence axis.
    masked = logits + amask_ref[...].reshape(bpt, S, 1)
    row_max = jnp.max(masked, axis=1)                                       # (bpt, V)

    # Guessed-letter fill applied after the reduction.  `has_mask` is 0 if the
    # row has at least one MASK position and -inf otherwise, so
    # -1e9 + has_mask reproduces the original "fill before max" semantics.
    has_mask = jnp.max(amask_ref[...], axis=1, keepdims=True)               # (bpt, 1)
    out_ref[...] = jnp.where(guess_ref[...] >= 0.5, -1.0e9 + has_mask, row_max)


def _round_up(x, m):
    return ((x + m - 1) // m) * m


def _batches_per_tile(B, S, max_rows=2048):
    """Largest divisor of B whose tile has at most `max_rows` sequence rows."""
    bpt = max(1, min(B, max_rows // max(S, 1)))
    while B % bpt:
        bpt -= 1
    return bpt


def canine_hangman_head(sequence_output, guessed_letters, input_ids,
                        w_fc, b_fc, w_out, b_out):
    """sequence_output: (B, S, 768) f32 (= base_model(...).last_hidden_state),
    guessed_letters: (B, 26) f32, input_ids: (B, S) int32,
    w_fc: (768+26, H), b_fc: (H,), w_out: (H, 26), b_out: (26,).
    Returns max_masked_logits: (B, 26) f32."""
    B, S, D = sequence_output.shape
    H = w_fc.shape[1]
    V = guessed_letters.shape[1]
    Hp = _round_up(H, 128)  # 328 -> 384: lane-aligned hidden dim

    # Split the fc weight; fold the (guess, b_fc) contribution into one
    # per-batch bias row in XLA (hoists the degenerate M=1/K=26 matmul).
    w_seq = w_fc[:D].astype(jnp.float32)                                    # (768, H)
    w_g = w_fc[D:].astype(jnp.float32)                                      # (26,  H)
    hg_bias = guessed_letters.astype(jnp.float32) @ w_g + b_fc.astype(jnp.float32)
    hg_bias = jnp.pad(hg_bias, ((0, 0), (0, Hp - H)))                       # (B, Hp)

    w1 = jnp.pad(w_seq, ((0, 0), (0, Hp - H))).astype(jnp.bfloat16)         # (768, Hp)
    w2 = jnp.pad(w_out.astype(jnp.float32), ((0, Hp - H), (0, 0))).astype(jnp.bfloat16)
    b2 = b_out.reshape(1, V).astype(jnp.float32)

    # Additive position mask: 0 where input_ids == MASK token, -inf elsewhere.
    add_mask = jnp.where(input_ids == MASK_TOKEN_ID, 0.0, -jnp.inf).astype(jnp.float32)
    guess = guessed_letters.astype(jnp.float32)
    seq = sequence_output.astype(jnp.bfloat16)

    bpt = _batches_per_tile(B, S)
    grid = (B // bpt,)

    flops = 2 * B * S * D * Hp + 2 * B * S * Hp * V
    bytes_accessed = (B * S * D * 2 + D * Hp * 2 + Hp * V * 2
                      + B * Hp * 4 + B * S * 4 + B * V * 4 + V * 4 + B * V * 4)
    cost = pl.CostEstimate(flops=flops, transcendentals=0,
                           bytes_accessed=bytes_accessed)

    out = pl.pallas_call(
        hangman_head_kernel,
        out_shape=jax.ShapeDtypeStruct((B, V), jnp.float32),
        grid_spec=pltpu.PrefetchScalarGridSpec(
            num_scalar_prefetch=0,
            grid=grid,
            in_specs=[
                pl.BlockSpec((bpt, S, D), lambda i: (i, 0, 0)),   # sequence_output (bf16)
                pl.BlockSpec((bpt, Hp), lambda i: (i, 0)),        # per-batch guess bias (f32)
                pl.BlockSpec((bpt, S), lambda i: (i, 0)),         # additive -inf mask (f32)
                pl.BlockSpec((bpt, V), lambda i: (i, 0)),         # guessed letters (f32)
                pl.BlockSpec((D, Hp), lambda i: (0, 0)),          # fc weight, seq part (bf16)
                pl.BlockSpec((Hp, V), lambda i: (0, 0)),          # output weight (bf16)
                pl.BlockSpec((1, V), lambda i: (0, 0)),           # output bias (f32)
            ],
            out_specs=pl.BlockSpec((bpt, V), lambda i: (i, 0)),
        ),
        compiler_params=pltpu.CompilerParams(
            dimension_semantics=("parallel",)),
        cost_estimate=cost,
    )(seq, hg_bias, add_mask, guess, w1, w2, b2)
    return out


def reference(seq, guess, ids, w_fc, b_fc, w_out, b_out):
    """Pure-JAX f32 reference mirroring the PyTorch forward (eval mode)."""
    B, S, _ = seq.shape
    V = guess.shape[1]
    g_rep = jnp.broadcast_to(guess[:, None, :], (B, S, V))
    cat = jnp.concatenate([seq, g_rep], axis=2)
    h = jnp.maximum(cat @ w_fc + b_fc, 0.0)
    logits = h @ w_out + b_out
    logits = jnp.where(g_rep == 1.0, -1.0e9, logits)
    is_mask = (ids == MASK_TOKEN_ID)[..., None]
    masked = jnp.where(is_mask, logits, -jnp.inf)
    return masked.max(axis=1)


if __name__ == "__main__":
    B, S, D = 2, 8, 768           # batch, seq_len, CANINE hidden size
    H, V = 328, 26                # head hidden_size, vocab_size

    key = jax.random.PRNGKey(0)
    k_seq, k_ids, k_guess, k_w1, k_b1, k_w2, k_b2 = jax.random.split(key, 7)

    # Surrogate for base_model(...).last_hidden_state (deterministic).
    sequence_output = jax.random.normal(k_seq, (B, S, D), dtype=jnp.float32)

    # input_ids: lowercase-letter codepoints with a few CANINE mask tokens per row.
    input_ids = jax.random.randint(k_ids, (B, S), 97, 123, dtype=jnp.int32)
    input_ids = input_ids.at[:, 1].set(MASK_TOKEN_ID)
    input_ids = input_ids.at[:, 4].set(MASK_TOKEN_ID)

    # guessed_letters: 0/1 multi-hot over 26 letters.
    guessed_letters = jax.random.bernoulli(k_guess, 0.3, (B, V)).astype(jnp.float32)

    # Deterministic parameter init (PyTorch Linear-style uniform bounds).
    fan_in_fc = D + V
    w_fc = jax.random.uniform(k_w1, (fan_in_fc, H), jnp.float32,
                              -1.0 / np.sqrt(fan_in_fc), 1.0 / np.sqrt(fan_in_fc))
    b_fc = jax.random.uniform(k_b1, (H,), jnp.float32,
                              -1.0 / np.sqrt(fan_in_fc), 1.0 / np.sqrt(fan_in_fc))
    w_out = jax.random.uniform(k_w2, (H, V), jnp.float32,
                               -1.0 / np.sqrt(H), 1.0 / np.sqrt(H))
    b_out = jax.random.uniform(k_b2, (V,), jnp.float32,
                               -1.0 / np.sqrt(H), 1.0 / np.sqrt(H))

    out = canine_hangman_head(sequence_output, guessed_letters, input_ids,
                              w_fc, b_fc, w_out, b_out)
    out = jax.block_until_ready(out)

    ref = reference(sequence_output, guessed_letters, input_ids,
                    w_fc, b_fc, w_out, b_out)
    np.testing.assert_allclose(np.asarray(out), np.asarray(ref),
                               rtol=1e-2, atol=1e-2)
    print("KERNEL_OK")
</pallas_src>

<mosaic_0001>
module attributes {stable_mosaic.version = 11 : i64} {
  func.func @hangman_head_kernel(%arg0: i32, %arg1: memref<2x8x768xbf16, #tpu.memory_space<vmem>>, %arg2: memref<2x384xf32, #tpu.memory_space<vmem>>, %arg3: memref<2x8xf32, #tpu.memory_space<vmem>>, %arg4: memref<2x26xf32, #tpu.memory_space<vmem>>, %arg5: memref<768x384xbf16, #tpu.memory_space<vmem>>, %arg6: memref<384x26xbf16, #tpu.memory_space<vmem>>, %arg7: memref<1x26xf32, #tpu.memory_space<vmem>>, %arg8: memref<2x26xf32, #tpu.memory_space<vmem>>) attributes {dimension_semantics = [#tpu.dimension_semantics<parallel>], iteration_bounds = array<i64: 1>, scalar_prefetch = 0 : i64, scratch_operands = 0 : i64, tpu.core_type = #tpu.core_type<tc>, window_params = [{transform_indices = @transform_0, window_bounds = array<i64: 2, 8, 768>}, {transform_indices = @transform_1, window_bounds = array<i64: 2, 384>}, {transform_indices = @transform_2, window_bounds = array<i64: 2, 8>}, {transform_indices = @transform_3, window_bounds = array<i64: 2, 26>}, {pipeline_mode = #tpu.pipeline_mode<synchronous>, transform_indices = @transform_4, window_bounds = array<i64: 768, 384>}, {pipeline_mode = #tpu.pipeline_mode<synchronous>, transform_indices = @transform_5, window_bounds = array<i64: 384, 26>}, {pipeline_mode = #tpu.pipeline_mode<synchronous>, transform_indices = @transform_6, window_bounds = array<i64: 1, 26>}, {transform_indices = @transform_7, window_bounds = array<i64: 2, 26>}]} {
    %c0 = arith.constant 0 : index
    %c0_0 = arith.constant 0 : index
    %c0_1 = arith.constant 0 : index
    %0 = vector.load %arg1[%c0, %c0_0, %c0_1] : memref<2x8x768xbf16, #tpu.memory_space<vmem>>, vector<2x8x768xbf16>
    %1 = vector.shape_cast %0 : vector<2x8x768xbf16> to vector<16x768xbf16>
    %c0_2 = arith.constant 0 : index
    %c0_3 = arith.constant 0 : index
    %2 = vector.load %arg5[%c0_2, %c0_3] : memref<768x384xbf16, #tpu.memory_space<vmem>>, vector<768x384xbf16>
    %cst = arith.constant dense<0.000000e+00> : vector<16x384xf32>
    %3 = tpu.matmul %1, %2, %cst {dimension_numbers = #tpu.dot_dimension_numbers<[1], [0], [0], [1], [0, 0, 1, 1], [], []>} : vector<16x768xbf16>, vector<768x384xbf16>, vector<16x384xf32> -> vector<16x384xf32>
    %4 = vector.shape_cast %3 : vector<16x384xf32> to vector<2x8x384xf32>
    %c0_4 = arith.constant 0 : index
    %c0_5 = arith.constant 0 : index
    %5 = vector.load %arg2[%c0_4, %c0_5] : memref<2x384xf32, #tpu.memory_space<vmem>>, vector<2x384xf32>
    %6 = vector.shape_cast %5 : vector<2x384xf32> to vector<2x1x384xf32>
    %7 = vector.broadcast %6 : vector<2x1x384xf32> to vector<2x8x384xf32>
    %8 = arith.addf %4, %7 : vector<2x8x384xf32>
    %cst_6 = arith.constant 0.000000e+00 : f32
    %9 = vector.broadcast %cst_6 : f32 to vector<2x8x384xf32>
    %10 = arith.maximumf %8, %9 : vector<2x8x384xf32>
    %11 = vector.shape_cast %10 : vector<2x8x384xf32> to vector<16x384xf32>
    %12 = arith.truncf %11 : vector<16x384xf32> to vector<16x384xbf16>
    %c0_7 = arith.constant 0 : index
    %c0_8 = arith.constant 0 : index
    %13 = vector.load %arg6[%c0_7, %c0_8] : memref<384x26xbf16, #tpu.memory_space<vmem>>, vector<384x26xbf16>
    %cst_9 = arith.constant dense<0.000000e+00> : vector<16x26xf32>
    %14 = tpu.matmul %12, %13, %cst_9 {dimension_numbers = #tpu.dot_dimension_numbers<[1], [0], [0], [1], [0, 0, 1, 1], [], []>} : vector<16x384xbf16>, vector<384x26xbf16>, vector<16x26xf32> -> vector<16x26xf32>
    %15 = vector.shape_cast %14 : vector<16x26xf32> to vector<2x8x26xf32>
    %c0_10 = arith.constant 0 : index
    %c0_11 = arith.constant 0 : index
    %16 = vector.load %arg7[%c0_10, %c0_11] : memref<1x26xf32, #tpu.memory_space<vmem>>, vector<1x26xf32>
    %17 = vector.shape_cast %16 : vector<1x26xf32> to vector<1x1x26xf32>
    %18 = vector.broadcast %17 : vector<1x1x26xf32> to vector<2x8x26xf32>
    %19 = arith.addf %15, %18 : vector<2x8x26xf32>
    %c0_12 = arith.constant 0 : index
    %c0_13 = arith.constant 0 : index
    %20 = vector.load %arg3[%c0_12, %c0_13] : memref<2x8xf32, #tpu.memory_space<vmem>>, vector<2x8xf32>
    %21 = vector.shape_cast %20 : vector<2x8xf32> to vector<2x8x1xf32>
    %22 = vector.broadcast %21 : vector<2x8x1xf32> to vector<2x8x26xf32>
    %23 = arith.addf %19, %22 : vector<2x8x26xf32>
    %cst_14 = arith.constant dense<0xFF800000> : vector<2x26xf32>
    %24 = vector.multi_reduction <maximumf>, %23, %cst_14 [1] : vector<2x8x26xf32> to vector<2x26xf32>
    %c0_15 = arith.constant 0 : index
    %c0_16 = arith.constant 0 : index
    %25 = vector.load %arg3[%c0_15, %c0_16] : memref<2x8xf32, #tpu.memory_space<vmem>>, vector<2x8xf32>
    %cst_17 = arith.constant dense<0xFF800000> : vector<2xf32>
    %26 = vector.multi_reduction <maximumf>, %25, %cst_17 [1] : vector<2x8xf32> to vector<2xf32>
    %27 = vector.shape_cast %26 : vector<2xf32> to vector<2x1xf32>
    %c0_18 = arith.constant 0 : index
    %c0_19 = arith.constant 0 : index
    %28 = vector.load %arg4[%c0_18, %c0_19] : memref<2x26xf32, #tpu.memory_space<vmem>>, vector<2x26xf32>
    %cst_20 = arith.constant 5.000000e-01 : f32
    %29 = vector.broadcast %cst_20 : f32 to vector<2x26xf32>
    %30 = arith.cmpf oge, %28, %29 : vector<2x26xf32>
    %cst_21 = arith.constant -1.000000e+09 : f32
    %31 = vector.broadcast %cst_21 : f32 to vector<2x1xf32>
    %32 = arith.addf %31, %27 : vector<2x1xf32>
    %33 = vector.shape_cast %32 : vector<2x1xf32> to vector<2x1xf32>
    %34 = vector.broadcast %33 : vector<2x1xf32> to vector<2x26xf32>
    %35 = arith.select %30, %34, %24 : vector<2x26xi1>, vector<2x26xf32>
    %c0_22 = arith.constant 0 : index
    %c0_23 = arith.constant 0 : index
    %36 = vector.load %arg8[%c0_22, %c0_23] : memref<2x26xf32, #tpu.memory_space<vmem>>, vector<2x26xf32>
    tpu.vector_store %arg8[%c0_22, %c0_23], %35 {strides = array<i32>} : memref<2x26xf32, #tpu.memory_space<vmem>>, vector<2x26xf32>,
    return
  }
  func.func @transform_0(%arg0: i32) -> (i32, i32, i32) {
    %c0_i32 = arith.constant 0 : i32
    %c0_i32_0 = arith.constant 0 : i32
    %c0_i32_1 = arith.constant 0 : i32
    return %arg0, %c0_i32, %c0_i32_0 : i32, i32, i32
  }
  func.func @transform_1(%arg0: i32) -> (i32, i32) {
    %c0_i32 = arith.constant 0 : i32
    %c0_i32_0 = arith.constant 0 : i32
    return %arg0, %c0_i32 : i32, i32
  }
  func.func @transform_2(%arg0: i32) -> (i32, i32) {
    %c0_i32 = arith.constant 0 : i32
    %c0_i32_0 = arith.constant 0 : i32
    return %arg0, %c0_i32 : i32, i32
  }
  func.func @transform_3(%arg0: i32) -> (i32, i32) {
    %c0_i32 = arith.constant 0 : i32
    %c0_i32_0 = arith.constant 0 : i32
    return %arg0, %c0_i32 : i32, i32
  }
  func.func @transform_4(%arg0: i32) -> (i32, i32) {
    %c0_i32 = arith.constant 0 : i32
    %c0_i32_0 = arith.constant 0 : i32
    %c0_i32_1 = arith.constant 0 : i32
    return %c0_i32, %c0_i32_0 : i32, i32
  }
  func.func @transform_5(%arg0: i32) -> (i32, i32) {
    %c0_i32 = arith.constant 0 : i32
    %c0_i32_0 = arith.constant 0 : i32
    %c0_i32_1 = arith.constant 0 : i32
    return %c0_i32, %c0_i32_0 : i32, i32
  }
  func.func @transform_6(%arg0: i32) -> (i32, i32) {
    %c0_i32 = arith.constant 0 : i32
    %c0_i32_0 = arith.constant 0 : i32
    %c0_i32_1 = arith.constant 0 : i32
    return %c0_i32, %c0_i32_0 : i32, i32
  }
  func.func @transform_7(%arg0: i32) -> (i32, i32) {
    %c0_i32 = arith.constant 0 : i32
    %c0_i32_0 = arith.constant 0 : i32
    return %arg0, %c0_i32 : i32, i32
  }
}

</mosaic_0001>

<llo_original>
// kernel: tpu_custom_call.1
$region0: #{tpu_custom_call.1}
  #allocation0 [shape = 'u32[]', space=smem, size = 0x4, offset = 0x4, fixed_abs, tag = 'smem constant byte address 0x4 - core index']
  #allocation1 [shape = 'u32[144,128]{1,0:T(1,128)}', space=vmem, size = 0x12000, scoped, tag = 'internal scratch']
  %s0 = inlined_call_operand.vmem [shape: bf16[2,8,768], index: 0, kind: input, shape index: {}]
  %s1 = inlined_call_operand.vmem [shape: f32[2,384], index: 1, kind: input, shape index: {}]
  %s2 = inlined_call_operand.vmem [shape: f32[2,8], index: 2, kind: input, shape index: {}]
  %s3 = inlined_call_operand.vmem [shape: f32[2,26], index: 3, kind: input, shape index: {}]
  %s4 = inlined_call_operand.hbm [shape: bf16[768,384], index: 4, kind: input, shape index: {}]
  %s5 = inlined_call_operand.vmem [shape: bf16[384,26], index: 5, kind: input, shape index: {}]
  %s6 = inlined_call_operand.vmem [shape: f32[1,26], index: 6, kind: input, shape index: {}]
  %s7 = inlined_call_operand.hbm [shape: f32[2,26], index: 7, kind: output, shape index: {}]
  %s8 = sld [smem:[#allocation0]]
  $region42: #{tpu_custom_call.1} parent=0
    _
  %s10 = ssub.s32 1, %s8
  %s11 = scalar_select 0, %s10, %s8
  $region1: #{tpu_custom_call.1} parent=0
    #allocation2 [shape = 'u8[589824]{0}', space=vmem, size = 0x90000, scoped, tag = 'input window, operand 4, single buffered']
    #allocation3 [shape = 's32[1]{0}', space=sflag, size = 0x4, scoped, tag = 'scoped memory for tpu_custom_call.1']
    #allocation4 [shape = 's32[1]{0}', space=sflag, size = 0x4, scoped, tag = 'scoped memory for tpu_custom_call.1']
    #allocation5 [shape = 'u8[1024]{0}', space=vmem, size = 0x400, scoped, tag = 'output window, operand 0, single buffered']
    %12 = vsyncpa [#allocation3], 0
    %13 = vsyncpa [#allocation4], 0
    // Predicated region
    $region2: #{tpu_custom_call.1} parent=1 // pred_check
      _
    $region3: #{tpu_custom_call.1} parent=1 // pred_check_branch
      %15 = sbr.rel (0) target = $region5
    $region4: #{tpu_custom_call.1} parent=1 // pred_region
      _
    $region5: #{tpu_custom_call.1} parent=1 // pred_fallthru
      _
    // Predicated region
    $region6: #{tpu_custom_call.1} parent=1 // pred_check
      _
    $region7: #{tpu_custom_call.1} parent=1 // pred_check_branch
      %17 = sbr.rel (0) target = $region9
    $region8: #{tpu_custom_call.1} parent=1 // pred_region
      _
    $region9: #{tpu_custom_call.1} parent=1 // pred_fallthru
      _
    // Predicated region
    $region10: #{tpu_custom_call.1} parent=1 // pred_check
      _
    $region11: #{tpu_custom_call.1} parent=1 // pred_check_branch
      %19 = sbr.rel (0) target = $region13
    $region12: #{tpu_custom_call.1} parent=1 // pred_region
      _
    $region13: #{tpu_custom_call.1} parent=1 // pred_fallthru
      _
    // Predicated region
    $region14: #{tpu_custom_call.1} parent=1 // pred_check
      _
    $region15: #{tpu_custom_call.1} parent=1 // pred_check_branch
      %21 = sbr.rel (0) target = $region17
    $region16: #{tpu_custom_call.1} parent=1 // pred_region
      _
    $region17: #{tpu_custom_call.1} parent=1 // pred_fallthru
      _
    // Predicated region
    $region18: #{tpu_custom_call.1} parent=1 // pred_check
      _
    $region19: #{tpu_custom_call.1} parent=1 // pred_check_branch
      %23 = sbr.rel (0) target = $region21
    $region20: #{tpu_custom_call.1} parent=1 // pred_region
      %s25 = ssub.s32 18432, 18432
      %26 = vsyncadd [#allocation3], %s25
      %s27 = sshll.u32 [#allocation2], 4
      %s28 = int_to_ptr.vmem [resolvable:$true] %s27
      %33 = dma.hbm_to_vmem [thread:$0]  %s4, 18432, %s28, [#allocation3], 192, 192, 12
    $region21: #{tpu_custom_call.1} parent=1 // pred_fallthru
      _
    // Predicated region
    $region22: #{tpu_custom_call.1} parent=1 // pred_check
      _
    $region23: #{tpu_custom_call.1} parent=1 // pred_check_branch
      %35 = sbr.rel (0) target = $region25
    $region24: #{tpu_custom_call.1} parent=1 // pred_region
      _
    $region25: #{tpu_custom_call.1} parent=1 // pred_fallthru
      _
    // Predicated region
    $region26: #{tpu_custom_call.1} parent=1 // pred_check
      _
    $region27: #{tpu_custom_call.1} parent=1 // pred_check_branch
      %37 = sbr.rel (0) target = $region29
    $region28: #{tpu_custom_call.1} parent=1 // pred_region
      _
    $region29: #{tpu_custom_call.1} parent=1 // pred_fallthru
      _
    // Predicated region
    $region30: #{tpu_custom_call.1} parent=1 // pred_check
      _
    $region31: #{tpu_custom_call.1} parent=1 // pred_check_branch
      %39 = sbr.rel (0) target = $region33
    $region32: #{tpu_custom_call.1} parent=1 // pred_region
      %40 = dma.done [#allocation3], 18432
    $region33: #{tpu_custom_call.1} parent=1 // pred_fallthru
      _
    %v42 = vld [vmem:[%s0] sm:$0xff]
    %v43 = vld [vmem:[%s0 + $0x8] sm:$0xff]
    %v44 = vld [vmem:[%s0 + $0x10] sm:$0xff]
    %v45 = vld [vmem:[%s0 + $0x18] sm:$0xff]
    %v46 = vld [vmem:[%s0 + $0x20] sm:$0xff]
    %v47 = vld [vmem:[%s0 + $0x28] sm:$0xff]
    %v48 = vld [vmem:[#allocation2] sm:$0xff]
    %v49 = vld [vmem:[#allocation2 + $0x8] sm:$0xf]
    %v50 = vld [vmem:[#allocation2 + $0xc] sm:$0xff]
    %v51 = vld [vmem:[#allocation2 + $0x14] sm:$0xf]
    %v52 = vld [vmem:[#allocation2 + $0x18] sm:$0xff]
    %v53 = vld [vmem:[#allocation2 + $0x20] sm:$0xf]
    %v54 = vld [vmem:[#allocation2 + $0x24] sm:$0xff]
    %v55 = vld [vmem:[#allocation2 + $0x2c] sm:$0xf]
    %v56 = vld [vmem:[#allocation2 + $0x30] sm:$0xff]
    %v57 = vld [vmem:[#allocation2 + $0x38] sm:$0xf]
    %v58 = vld [vmem:[#allocation2 + $0x3c] sm:$0xff]
    %v59 = vld [vmem:[#allocation2 + $0x44] sm:$0xf]
    %v60 = vld [vmem:[#allocation2 + $0x48] sm:$0xff]
    %v61 = vld [vmem:[#allocation2 + $0x50] sm:$0xf]
    %v62 = vld [vmem:[#allocation2 + $0x54] sm:$0xff]
    %v63 = vld [vmem:[#allocation2 + $0x5c] sm:$0xf]
    %v64 = vld [vmem:[#allocation2 + $0x60] sm:$0xff]
    %v65 = vld [vmem:[#allocation2 + $0x68] sm:$0xf]
    %v66 = vld [vmem:[#allocation2 + $0x6c] sm:$0xff]
    %v67 = vld [vmem:[#allocation2 + $0x74] sm:$0xf]
    %v68 = vld [vmem:[#allocation2 + $0x78] sm:$0xff]
    %v69 = vld [vmem:[#allocation2 + $0x80] sm:$0xf]
    %v70 = vld [vmem:[#allocation2 + $0x84] sm:$0xff]
    %v71 = vld [vmem:[#allocation2 + $0x8c] sm:$0xf]
    %v72 = vld [vmem:[#allocation2 + $0x90] sm:$0xff]
    %v73 = vld [vmem:[#allocation2 + $0x98] sm:$0xf]
    %v74 = vld [vmem:[#allocation2 + $0x9c] sm:$0xff]
    %v75 = vld [vmem:[#allocation2 + $0xa4] sm:$0xf]
    %v76 = vld [vmem:[#allocation2 + $0xa8] sm:$0xff]
    %v77 = vld [vmem:[#allocation2 + $0xb0] sm:$0xf]
    %v78 = vld [vmem:[#allocation2 + $0xb4] sm:$0xff]
    %v79 = vld [vmem:[#allocation2 + $0xbc] sm:$0xf]
    %v80 = vld [vmem:[#allocation2 + $0xc0] sm:$0xff]
    %v81 = vld [vmem:[#allocation2 + $0xc8] sm:$0xf]
    %v82 = vld [vmem:[#allocation2 + $0xcc] sm:$0xff]
    %v83 = vld [vmem:[#allocation2 + $0xd4] sm:$0xf]
    %v84 = vld [vmem:[#allocation2 + $0xd8] sm:$0xff]
    %v85 = vld [vmem:[#allocation2 + $0xe0] sm:$0xf]
    %v86 = vld [vmem:[#allocation2 + $0xe4] sm:$0xff]
    %v87 = vld [vmem:[#allocation2 + $0xec] sm:$0xf]
    %v88 = vld [vmem:[#allocation2 + $0xf0] sm:$0xff]
    %v89 = vld [vmem:[#allocation2 + $0xf8] sm:$0xf]
    %v90 = vld [vmem:[#allocation2 + $0xfc] sm:$0xff]
    %v91 = vld [vmem:[#allocation2 + $0x104] sm:$0xf]
    %v92 = vld [vmem:[#allocation2 + $0x108] sm:$0xff]
    %v93 = vld [vmem:[#allocation2 + $0x110] sm:$0xf]
    %v94 = vld [vmem:[#allocation2 + $0x114] sm:$0xff]
    %v95 = vld [vmem:[#allocation2 + $0x11c] sm:$0xf]
    %v96 = vld [vmem:[#allocation2 + $0x120] sm:$0xff]
    %v97 = vld [vmem:[#allocation2 + $0x128] sm:$0xf]
    %v98 = vld [vmem:[#allocation2 + $0x12c] sm:$0xff]
    %v99 = vld [vmem:[#allocation2 + $0x134] sm:$0xf]
    %v100 = vld [vmem:[#allocation2 + $0x138] sm:$0xff]
    %v101 = vld [vmem:[#allocation2 + $0x140] sm:$0xf]
    %v102 = vld [vmem:[#allocation2 + $0x144] sm:$0xff]
    %v103 = vld [vmem:[#allocation2 + $0x14c] sm:$0xf]
    %v104 = vld [vmem:[#allocation2 + $0x150] sm:$0xff]
    %v105 = vld [vmem:[#allocation2 + $0x158] sm:$0xf]
    %v106 = vld [vmem:[#allocation2 + $0x15c] sm:$0xff]
    %v107 = vld [vmem:[#allocation2 + $0x164] sm:$0xf]
    %v108 = vld [vmem:[#allocation2 + $0x168] sm:$0xff]
    %v109 = vld [vmem:[#allocation2 + $0x170] sm:$0xf]
    %v110 = vld [vmem:[#allocation2 + $0x174] sm:$0xff]
    %v111 = vld [vmem:[#allocation2 + $0x17c] sm:$0xf]
    %v112 = vld [vmem:[#allocation2 + $0x180] sm:$0xff]
    %v113 = vld [vmem:[#allocation2 + $0x188] sm:$0xf]
    %v114 = vld [vmem:[#allocation2 + $0x18c] sm:$0xff]
    %v115 = vld [vmem:[#allocation2 + $0x194] sm:$0xf]
    %v116 = vld [vmem:[#allocation2 + $0x198] sm:$0xff]
    %v117 = vld [vmem:[#allocation2 + $0x1a0] sm:$0xf]
    %v118 = vld [vmem:[#allocation2 + $0x1a4] sm:$0xff]
    %v119 = vld [vmem:[#allocation2 + $0x1ac] sm:$0xf]
    %v120 = vld [vmem:[#allocation2 + $0x1b0] sm:$0xff]
    %v121 = vld [vmem:[#allocation2 + $0x1b8] sm:$0xf]
    %v122 = vld [vmem:[#allocation2 + $0x1bc] sm:$0xff]
    %v123 = vld [vmem:[#allocation2 + $0x1c4] sm:$0xf]
    %v124 = vld [vmem:[#allocation2 + $0x1c8] sm:$0xff]
    %v125 = vld [vmem:[#allocation2 + $0x1d0] sm:$0xf]
    %v126 = vld [vmem:[#allocation2 + $0x1d4] sm:$0xff]
    %v127 = vld [vmem:[#allocation2 + $0x1dc] sm:$0xf]
    %v128 = vld [vmem:[#allocation2 + $0x1e0] sm:$0xff]
    %v129 = vld [vmem:[#allocation2 + $0x1e8] sm:$0xf]
    %v130 = vld [vmem:[#allocation2 + $0x1ec] sm:$0xff]
    %v131 = vld [vmem:[#allocation2 + $0x1f4] sm:$0xf]
    %v132 = vld [vmem:[#allocation2 + $0x1f8] sm:$0xff]
    %v133 = vld [vmem:[#allocation2 + $0x200] sm:$0xf]
    %v134 = vld [vmem:[#allocation2 + $0x204] sm:$0xff]
    %v135 = vld [vmem:[#allocation2 + $0x20c] sm:$0xf]
    %v136 = vld [vmem:[#allocation2 + $0x210] sm:$0xff]
    %v137 = vld [vmem:[#allocation2 + $0x218] sm:$0xf]
    %v138 = vld [vmem:[#allocation2 + $0x21c] sm:$0xff]
    %v139 = vld [vmem:[#allocation2 + $0x224] sm:$0xf]
    %v140 = vld [vmem:[#allocation2 + $0x228] sm:$0xff]
    %v141 = vld [vmem:[#allocation2 + $0x230] sm:$0xf]
    %v142 = vld [vmem:[#allocation2 + $0x234] sm:$0xff]
    %v143 = vld [vmem:[#allocation2 + $0x23c] sm:$0xf]
    %v144 = vld [vmem:[#allocation2 + $0x240] sm:$0xff]
    %v145 = vld [vmem:[#allocation2 + $0x248] sm:$0xf]
    %v146 = vld [vmem:[#allocation2 + $0x24c] sm:$0xff]
    %v147 = vld [vmem:[#allocation2 + $0x254] sm:$0xf]
    %v148 = vld [vmem:[#allocation2 + $0x258] sm:$0xff]
    %v149 = vld [vmem:[#allocation2 + $0x260] sm:$0xf]
    %v150 = vld [vmem:[#allocation2 + $0x264] sm:$0xff]
    %v151 = vld [vmem:[#allocation2 + $0x26c] sm:$0xf]
    %v152 = vld [vmem:[#allocation2 + $0x270] sm:$0xff]
    %v153 = vld [vmem:[#allocation2 + $0x278] sm:$0xf]
    %v154 = vld [vmem:[#allocation2 + $0x27c] sm:$0xff]
    %v155 = vld [vmem:[#allocation2 + $0x284] sm:$0xf]
    %v156 = vld [vmem:[#allocation2 + $0x288] sm:$0xff]
    %v157 = vld [vmem:[#allocation2 + $0x290] sm:$0xf]
    %v158 = vld [vmem:[#allocation2 + $0x294] sm:$0xff]
    %v159 = vld [vmem:[#allocation2 + $0x29c] sm:$0xf]
    %v160 = vld [vmem:[#allocation2 + $0x2a0] sm:$0xff]
    %v161 = vld [vmem:[#allocation2 + $0x2a8] sm:$0xf]
    %v162 = vld [vmem:[#allocation2 + $0x2ac] sm:$0xff]
    %v163 = vld [vmem:[#allocation2 + $0x2b4] sm:$0xf]
    %v164 = vld [vmem:[#allocation2 + $0x2b8] sm:$0xff]
    %v165 = vld [vmem:[#allocation2 + $0x2c0] sm:$0xf]
    %v166 = vld [vmem:[#allocation2 + $0x2c4] sm:$0xff]
    %v167 = vld [vmem:[#allocation2 + $0x2cc] sm:$0xf]
    %v168 = vld [vmem:[#allocation2 + $0x2d0] sm:$0xff]
    %v169 = vld [vmem:[#allocation2 + $0x2d8] sm:$0xf]
    %v170 = vld [vmem:[#allocation2 + $0x2dc] sm:$0xff]
    %v171 = vld [vmem:[#allocation2 + $0x2e4] sm:$0xf]
    %v172 = vld [vmem:[#allocation2 + $0x2e8] sm:$0xff]
    %v173 = vld [vmem:[#allocation2 + $0x2f0] sm:$0xf]
    %v174 = vld [vmem:[#allocation2 + $0x2f4] sm:$0xff]
    %v175 = vld [vmem:[#allocation2 + $0x2fc] sm:$0xf]
    %v176 = vld [vmem:[#allocation2 + $0x300] sm:$0xff]
    %v177 = vld [vmem:[#allocation2 + $0x308] sm:$0xf]
    %v178 = vld [vmem:[#allocation2 + $0x30c] sm:$0xff]
    %v179 = vld [vmem:[#allocation2 + $0x314] sm:$0xf]
    %v180 = vld [vmem:[#allocation2 + $0x318] sm:$0xff]
    %v181 = vld [vmem:[#allocation2 + $0x320] sm:$0xf]
    %v182 = vld [vmem:[#allocation2 + $0x324] sm:$0xff]
    %v183 = vld [vmem:[#allocation2 + $0x32c] sm:$0xf]
    %v184 = vld [vmem:[#allocation2 + $0x330] sm:$0xff]
    %v185 = vld [vmem:[#allocation2 + $0x338] sm:$0xf]
    %v186 = vld [vmem:[#allocation2 + $0x33c] sm:$0xff]
    %v187 = vld [vmem:[#allocation2 + $0x344] sm:$0xf]
    %v188 = vld [vmem:[#allocation2 + $0x348] sm:$0xff]
    %v189 = vld [vmem:[#allocation2 + $0x350] sm:$0xf]
    %v190 = vld [vmem:[#allocation2 + $0x354] sm:$0xff]
    %v191 = vld [vmem:[#allocation2 + $0x35c] sm:$0xf]
    %v192 = vld [vmem:[#allocation2 + $0x360] sm:$0xff]
    %v193 = vld [vmem:[#allocation2 + $0x368] sm:$0xf]
    %v194 = vld [vmem:[#allocation2 + $0x36c] sm:$0xff]
    %v195 = vld [vmem:[#allocation2 + $0x374] sm:$0xf]
    %v196 = vld [vmem:[#allocation2 + $0x378] sm:$0xff]
    %v197 = vld [vmem:[#allocation2 + $0x380] sm:$0xf]
    %v198 = vld [vmem:[#allocation2 + $0x384] sm:$0xff]
    %v199 = vld [vmem:[#allocation2 + $0x38c] sm:$0xf]
    %v200 = vld [vmem:[#allocation2 + $0x390] sm:$0xff]
    %v201 = vld [vmem:[#allocation2 + $0x398] sm:$0xf]
    %v202 = vld [vmem:[#allocation2 + $0x39c] sm:$0xff]
    %v203 = vld [vmem:[#allocation2 + $0x3a4] sm:$0xf]
    %v204 = vld [vmem:[#allocation2 + $0x3a8] sm:$0xff]
    %v205 = vld [vmem:[#allocation2 + $0x3b0] sm:$0xf]
    %v206 = vld [vmem:[#allocation2 + $0x3b4] sm:$0xff]
    %v207 = vld [vmem:[#allocation2 + $0x3bc] sm:$0xf]
    %v208 = vld [vmem:[#allocation2 + $0x3c0] sm:$0xff]
    %v209 = vld [vmem:[#allocation2 + $0x3c8] sm:$0xf]
    %v210 = vld [vmem:[#allocation2 + $0x3cc] sm:$0xff]
    %v211 = vld [vmem:[#allocation2 + $0x3d4] sm:$0xf]
    %v212 = vld [vmem:[#allocation2 + $0x3d8] sm:$0xff]
    %v213 = vld [vmem:[#allocation2 + $0x3e0] sm:$0xf]
    %v214 = vld [vmem:[#allocation2 + $0x3e4] sm:$0xff]
    %v215 = vld [vmem:[#allocation2 + $0x3ec] sm:$0xf]
    %v216 = vld [vmem:[#allocation2 + $0x3f0] sm:$0xff]
    %v217 = vld [vmem:[#allocation2 + $0x3f8] sm:$0xf]
    %v218 = vld [vmem:[#allocation2 + $0x3fc] sm:$0xff]
    %v219 = vld [vmem:[#allocation2 + $0x404] sm:$0xf]
    %v220 = vld [vmem:[#allocation2 + $0x408] sm:$0xff]
    %v221 = vld [vmem:[#allocation2 + $0x410] sm:$0xf]
    %v222 = vld [vmem:[#allocation2 + $0x414] sm:$0xff]
    %v223 = vld [vmem:[#allocation2 + $0x41c] sm:$0xf]
    %v224 = vld [vmem:[#allocation2 + $0x420] sm:$0xff]
    %v225 = vld [vmem:[#allocation2 + $0x428] sm:$0xf]
    %v226 = vld [vmem:[#allocation2 + $0x42c] sm:$0xff]
    %v227 = vld [vmem:[#allocation2 + $0x434] sm:$0xf]
    %v228 = vld [vmem:[#allocation2 + $0x438] sm:$0xff]
    %v229 = vld [vmem:[#allocation2 + $0x440] sm:$0xf]
    %v230 = vld [vmem:[#allocation2 + $0x444] sm:$0xff]
    %v231 = vld [vmem:[#allocation2 + $0x44c] sm:$0xf]
    %v232 = vld [vmem:[#allocation2 + $0x450] sm:$0xff]
    %v233 = vld [vmem:[#allocation2 + $0x458] sm:$0xf]
    %v234 = vld [vmem:[#allocation2 + $0x45c] sm:$0xff]
    %v235 = vld [vmem:[#allocation2 + $0x464] sm:$0xf]
    %v236 = vld [vmem:[#allocation2 + $0x468] sm:$0xff]
    %v237 = vld [vmem:[#allocation2 + $0x470] sm:$0xf]
    %v238 = vld [vmem:[#allocation2 + $0x474] sm:$0xff]
    %v239 = vld [vmem:[#allocation2 + $0x47c] sm:$0xf]
    %v246 = vunpack.c.l.b16 %v42
    %v247 = vunpack.c.h.b16 %v42
    %v248 = vunpack.c.l.b16 %v43
    %v249 = vunpack.c.h.b16 %v43
    %v250 = vunpack.c.l.b16 %v44
    %v251 = vunpack.c.h.b16 %v44
    %v252 = vunpack.c.l.b16 %v45
    %v253 = vunpack.c.h.b16 %v45
    %v254 = vunpack.c.l.b16 %v46
    %v255 = vunpack.c.h.b16 %v46
    %v256 = vunpack.c.l.b16 %v47
    %v257 = vunpack.c.h.b16 %v47
    %v258 = vpack.c.b16 %v252, %v246
    %v259 = vpack.c.b16 %v253, %v247
    %v260 = vpack.c.b16 %v254, %v248
    %v261 = vpack.c.b16 %v255, %v249
    %v262 = vpack.c.b16 %v256, %v250
    %v263 = vpack.c.b16 %v257, %v251
    %v462 = vunpack.c.l.b16 %v48
    %v463 = vunpack.c.h.b16 %v48
    %v464 = vunpack.c.l.b16 %v49
    %v465 = vunpack.c.l.b16 %v50
    %v466 = vunpack.c.h.b16 %v50
    %v467 = vunpack.c.l.b16 %v51
    %v468 = vunpack.c.l.b16 %v52
    %v469 = vunpack.c.h.b16 %v52
    %v470 = vunpack.c.l.b16 %v53
    %v471 = vunpack.c.l.b16 %v54
    %v472 = vunpack.c.h.b16 %v54
    %v473 = vunpack.c.l.b16 %v55
    %v474 = vunpack.c.l.b16 %v56
    %v475 = vunpack.c.h.b16 %v56
    %v476 = vunpack.c.l.b16 %v57
    %v477 = vunpack.c.l.b16 %v58
    %v478 = vunpack.c.h.b16 %v58
    %v479 = vunpack.c.l.b16 %v59
    %v480 = vunpack.c.l.b16 %v60
    %v481 = vunpack.c.h.b16 %v60
    %v482 = vunpack.c.l.b16 %v61
    %v483 = vunpack.c.l.b16 %v62
    %v484 = vunpack.c.h.b16 %v62
    %v485 = vunpack.c.l.b16 %v63
    %v486 = vunpack.c.l.b16 %v64
    %v487 = vunpack.c.h.b16 %v64
    %v488 = vunpack.c.l.b16 %v65
    %v489 = vunpack.c.l.b16 %v66
    %v490 = vunpack.c.h.b16 %v66
    %v491 = vunpack.c.l.b16 %v67
    %v492 = vunpack.c.l.b16 %v68
    %v493 = vunpack.c.h.b16 %v68
    %v494 = vunpack.c.l.b16 %v69
    %v495 = vunpack.c.l.b16 %v70
    %v496 = vunpack.c.h.b16 %v70
    %v497 = vunpack.c.l.b16 %v71
    %v498 = vunpack.c.l.b16 %v72
    %v499 = vunpack.c.h.b16 %v72
    %v500 = vunpack.c.l.b16 %v73
    %v501 = vunpack.c.l.b16 %v74
    %v502 = vunpack.c.h.b16 %v74
    %v503 = vunpack.c.l.b16 %v75
    %v504 = vunpack.c.l.b16 %v76
    %v505 = vunpack.c.h.b16 %v76
    %v506 = vunpack.c.l.b16 %v77
    %v507 = vunpack.c.l.b16 %v78
    %v508 = vunpack.c.h.b16 %v78
    %v509 = vunpack.c.l.b16 %v79
    %v510 = vunpack.c.l.b16 %v80
    %v511 = vunpack.c.h.b16 %v80
    %v512 = vunpack.c.l.b16 %v81
    %v513 = vunpack.c.l.b16 %v82
    %v514 = vunpack.c.h.b16 %v82
    %v515 = vunpack.c.l.b16 %v83
    %v516 = vunpack.c.l.b16 %v84
    %v517 = vunpack.c.h.b16 %v84
    %v518 = vunpack.c.l.b16 %v85
    %v519 = vunpack.c.l.b16 %v86
    %v520 = vunpack.c.h.b16 %v86
    %v521 = vunpack.c.l.b16 %v87
    %v522 = vunpack.c.l.b16 %v88
    %v523 = vunpack.c.h.b16 %v88
    %v524 = vunpack.c.l.b16 %v89
    %v525 = vunpack.c.l.b16 %v90
    %v526 = vunpack.c.h.b16 %v90
    %v527 = vunpack.c.l.b16 %v91
    %v528 = vunpack.c.l.b16 %v92
    %v529 = vunpack.c.h.b16 %v92
    %v530 = vunpack.c.l.b16 %v93
    %v531 = vunpack.c.l.b16 %v94
    %v532 = vunpack.c.h.b16 %v94
    %v533 = vunpack.c.l.b16 %v95
    %v534 = vunpack.c.l.b16 %v96
    %v535 = vunpack.c.h.b16 %v96
    %v536 = vunpack.c.l.b16 %v97
    %v537 = vunpack.c.l.b16 %v98
    %v538 = vunpack.c.h.b16 %v98
    %v539 = vunpack.c.l.b16 %v99
    %v540 = vunpack.c.l.b16 %v100
    %v541 = vunpack.c.h.b16 %v100
    %v542 = vunpack.c.l.b16 %v101
    %v543 = vunpack.c.l.b16 %v102
    %v544 = vunpack.c.h.b16 %v102
    %v545 = vunpack.c.l.b16 %v103
    %v546 = vunpack.c.l.b16 %v104
    %v547 = vunpack.c.h.b16 %v104
    %v548 = vunpack.c.l.b16 %v105
    %v549 = vunpack.c.l.b16 %v106
    %v550 = vunpack.c.h.b16 %v106
    %v551 = vunpack.c.l.b16 %v107
    %v552 = vunpack.c.l.b16 %v108
    %v553 = vunpack.c.h.b16 %v108
    %v554 = vunpack.c.l.b16 %v109
    %v555 = vunpack.c.l.b16 %v110
    %v556 = vunpack.c.h.b16 %v110
    %v557 = vunpack.c.l.b16 %v111
    %v558 = vunpack.c.l.b16 %v112
    %v559 = vunpack.c.h.b16 %v112
    %v560 = vunpack.c.l.b16 %v113
    %v561 = vunpack.c.l.b16 %v114
    %v562 = vunpack.c.h.b16 %v114
    %v563 = vunpack.c.l.b16 %v115
    %v564 = vunpack.c.l.b16 %v116
    %v565 = vunpack.c.h.b16 %v116
    %v566 = vunpack.c.l.b16 %v117
    %v567 = vunpack.c.l.b16 %v118
    %v568 = vunpack.c.h.b16 %v118
    %v569 = vunpack.c.l.b16 %v119
    %v570 = vunpack.c.l.b16 %v120
    %v571 = vunpack.c.h.b16 %v120
    %v572 = vunpack.c.l.b16 %v121
    %v573 = vunpack.c.l.b16 %v122
    %v574 = vunpack.c.h.b16 %v122
    %v575 = vunpack.c.l.b16 %v123
    %v576 = vunpack.c.l.b16 %v124
    %v577 = vunpack.c.h.b16 %v124
    %v578 = vunpack.c.l.b16 %v125
    %v579 = vunpack.c.l.b16 %v126
    %v580 = vunpack.c.h.b16 %v126
    %v581 = vunpack.c.l.b16 %v127
    %v582 = vunpack.c.l.b16 %v128
    %v583 = vunpack.c.h.b16 %v128
    %v584 = vunpack.c.l.b16 %v129
    %v585 = vunpack.c.l.b16 %v130
    %v586 = vunpack.c.h.b16 %v130
    %v587 = vunpack.c.l.b16 %v131
    %v588 = vunpack.c.l.b16 %v132
    %v589 = vunpack.c.h.b16 %v132
    %v590 = vunpack.c.l.b16 %v133
    %v591 = vunpack.c.l.b16 %v134
    %v592 = vunpack.c.h.b16 %v134
    %v593 = vunpack.c.l.b16 %v135
    %v594 = vunpack.c.l.b16 %v136
    %v595 = vunpack.c.h.b16 %v136
    %v596 = vunpack.c.l.b16 %v137
    %v597 = vunpack.c.l.b16 %v138
    %v598 = vunpack.c.h.b16 %v138
    %v599 = vunpack.c.l.b16 %v139
    %v600 = vunpack.c.l.b16 %v140
    %v601 = vunpack.c.h.b16 %v140
    %v602 = vunpack.c.l.b16 %v141
    %v603 = vunpack.c.l.b16 %v142
    %v604 = vunpack.c.h.b16 %v142
    %v605 = vunpack.c.l.b16 %v143
    %v606 = vunpack.c.l.b16 %v144
    %v607 = vunpack.c.h.b16 %v144
    %v608 = vunpack.c.l.b16 %v145
    %v609 = vunpack.c.l.b16 %v146
    %v610 = vunpack.c.h.b16 %v146
    %v611 = vunpack.c.l.b16 %v147
    %v612 = vunpack.c.l.b16 %v148
    %v613 = vunpack.c.h.b16 %v148
    %v614 = vunpack.c.l.b16 %v149
    %v615 = vunpack.c.l.b16 %v150
    %v616 = vunpack.c.h.b16 %v150
    %v617 = vunpack.c.l.b16 %v151
    %v618 = vunpack.c.l.b16 %v152
    %v619 = vunpack.c.h.b16 %v152
    %v620 = vunpack.c.l.b16 %v153
    %v621 = vunpack.c.l.b16 %v154
    %v622 = vunpack.c.h.b16 %v154
    %v623 = vunpack.c.l.b16 %v155
    %v624 = vunpack.c.l.b16 %v156
    %v625 = vunpack.c.h.b16 %v156
    %v626 = vunpack.c.l.b16 %v157
    %v627 = vunpack.c.l.b16 %v158
    %v628 = vunpack.c.h.b16 %v158
    %v629 = vunpack.c.l.b16 %v159
    %v630 = vunpack.c.l.b16 %v160
    %v631 = vunpack.c.h.b16 %v160
    %v632 = vunpack.c.l.b16 %v161
    %v633 = vunpack.c.l.b16 %v162
    %v634 = vunpack.c.h.b16 %v162
    %v635 = vunpack.c.l.b16 %v163
    %v636 = vunpack.c.l.b16 %v164
    %v637 = vunpack.c.h.b16 %v164
    %v638 = vunpack.c.l.b16 %v165
    %v639 = vunpack.c.l.b16 %v166
    %v640 = vunpack.c.h.b16 %v166
    %v641 = vunpack.c.l.b16 %v167
    %v642 = vunpack.c.l.b16 %v168
    %v643 = vunpack.c.h.b16 %v168
    %v644 = vunpack.c.l.b16 %v169
    %v645 = vunpack.c.l.b16 %v170
    %v646 = vunpack.c.h.b16 %v170
    %v647 = vunpack.c.l.b16 %v171
    %v648 = vunpack.c.l.b16 %v172
    %v649 = vunpack.c.h.b16 %v172
    %v650 = vunpack.c.l.b16 %v173
    %v651 = vunpack.c.l.b16 %v174
    %v652 = vunpack.c.h.b16 %v174
    %v653 = vunpack.c.l.b16 %v175
    %v654 = vunpack.c.l.b16 %v176
    %v655 = vunpack.c.h.b16 %v176
    %v656 = vunpack.c.l.b16 %v177
    %v657 = vunpack.c.l.b16 %v178
    %v658 = vunpack.c.h.b16 %v178
    %v659 = vunpack.c.l.b16 %v179
    %v660 = vunpack.c.l.b16 %v180
    %v661 = vunpack.c.h.b16 %v180
    %v662 = vunpack.c.l.b16 %v181
    %v663 = vunpack.c.l.b16 %v182
    %v664 = vunpack.c.h.b16 %v182
    %v665 = vunpack.c.l.b16 %v183
    %v666 = vunpack.c.l.b16 %v184
    %v667 = vunpack.c.h.b16 %v184
    %v668 = vunpack.c.l.b16 %v185
    %v669 = vunpack.c.l.b16 %v186
    %v670 = vunpack.c.h.b16 %v186
    %v671 = vunpack.c.l.b16 %v187
    %v672 = vunpack.c.l.b16 %v188
    %v673 = vunpack.c.h.b16 %v188
    %v674 = vunpack.c.l.b16 %v189
    %v675 = vunpack.c.l.b16 %v190
    %v676 = vunpack.c.h.b16 %v190
    %v677 = vunpack.c.l.b16 %v191
    %v678 = vunpack.c.l.b16 %v192
    %v679 = vunpack.c.h.b16 %v192
    %v680 = vunpack.c.l.b16 %v193
    %v681 = vunpack.c.l.b16 %v194
    %v682 = vunpack.c.h.b16 %v194
    %v683 = vunpack.c.l.b16 %v195
    %v684 = vunpack.c.l.b16 %v196
    %v685 = vunpack.c.h.b16 %v196
    %v686 = vunpack.c.l.b16 %v197
    %v687 = vunpack.c.l.b16 %v198
    %v688 = vunpack.c.h.b16 %v198
    %v689 = vunpack.c.l.b16 %v199
    %v690 = vunpack.c.l.b16 %v200
    %v691 = vunpack.c.h.b16 %v200
    %v692 = vunpack.c.l.b16 %v201
    %v693 = vunpack.c.l.b16 %v202
    %v694 = vunpack.c.h.b16 %v202
    %v695 = vunpack.c.l.b16 %v203
    %v696 = vunpack.c.l.b16 %v204
    %v697 = vunpack.c.h.b16 %v204
    %v698 = vunpack.c.l.b16 %v205
    %v699 = vunpack.c.l.b16 %v206
    %v700 = vunpack.c.h.b16 %v206
    %v701 = vunpack.c.l.b16 %v207
    %v702 = vunpack.c.l.b16 %v208
    %v703 = vunpack.c.h.b16 %v208
    %v704 = vunpack.c.l.b16 %v209
    %v705 = vunpack.c.l.b16 %v210
    %v706 = vunpack.c.h.b16 %v210
    %v707 = vunpack.c.l.b16 %v211
    %v708 = vunpack.c.l.b16 %v212
    %v709 = vunpack.c.h.b16 %v212
    %v710 = vunpack.c.l.b16 %v213
    %v711 = vunpack.c.l.b16 %v214
    %v712 = vunpack.c.h.b16 %v214
    %v713 = vunpack.c.l.b16 %v215
    %v714 = vunpack.c.l.b16 %v216
    %v715 = vunpack.c.h.b16 %v216
    %v716 = vunpack.c.l.b16 %v217
    %v717 = vunpack.c.l.b16 %v218
    %v718 = vunpack.c.h.b16 %v218
    %v719 = vunpack.c.l.b16 %v219
    %v720 = vunpack.c.l.b16 %v220
    %v721 = vunpack.c.h.b16 %v220
    %v722 = vunpack.c.l.b16 %v221
    %v723 = vunpack.c.l.b16 %v222
    %v724 = vunpack.c.h.b16 %v222
    %v725 = vunpack.c.l.b16 %v223
    %v726 = vunpack.c.l.b16 %v224
    %v727 = vunpack.c.h.b16 %v224
    %v728 = vunpack.c.l.b16 %v225
    %v729 = vunpack.c.l.b16 %v226
    %v730 = vunpack.c.h.b16 %v226
    %v731 = vunpack.c.l.b16 %v227
    %v732 = vunpack.c.l.b16 %v228
    %v733 = vunpack.c.h.b16 %v228
    %v734 = vunpack.c.l.b16 %v229
    %v735 = vunpack.c.l.b16 %v230
    %v736 = vunpack.c.h.b16 %v230
    %v737 = vunpack.c.l.b16 %v231
    %v738 = vunpack.c.l.b16 %v232
    %v739 = vunpack.c.h.b16 %v232
    %v740 = vunpack.c.l.b16 %v233
    %v741 = vunpack.c.l.b16 %v234
    %v742 = vunpack.c.h.b16 %v234
    %v743 = vunpack.c.l.b16 %v235
    %v744 = vunpack.c.l.b16 %v236
    %v745 = vunpack.c.h.b16 %v236
    %v746 = vunpack.c.l.b16 %v237
    %v747 = vunpack.c.l.b16 %v238
    %v748 = vunpack.c.h.b16 %v238
    %v749 = vunpack.c.l.b16 %v239
    %v750 = vpack.c.b16 %v465, %v462
    %v751 = vpack.c.b16 %v466, %v463
    %v752 = vpack.c.b16 %v467, %v464
    %v753 = vpack.c.b16 %v471, %v468
    %v754 = vpack.c.b16 %v472, %v469
    %v755 = vpack.c.b16 %v473, %v470
    %v756 = vpack.c.b16 %v477, %v474
    %v757 = vpack.c.b16 %v478, %v475
    %v758 = vpack.c.b16 %v479, %v476
    %v759 = vpack.c.b16 %v483, %v480
    %v760 = vpack.c.b16 %v484, %v481
    %v761 = vpack.c.b16 %v485, %v482
    %v762 = vpack.c.b16 %v489, %v486
    %v763 = vpack.c.b16 %v490, %v487
    %v764 = vpack.c.b16 %v491, %v488
    %v765 = vpack.c.b16 %v495, %v492
    %v766 = vpack.c.b16 %v496, %v493
    %v767 = vpack.c.b16 %v497, %v494
    %v768 = vpack.c.b16 %v501, %v498
    %v769 = vpack.c.b16 %v502, %v499
    %v770 = vpack.c.b16 %v503, %v500
    %v771 = vpack.c.b16 %v507, %v504
    %v772 = vpack.c.b16 %v508, %v505
    %v773 = vpack.c.b16 %v509, %v506
    %v774 = vpack.c.b16 %v513, %v510
    %v775 = vpack.c.b16 %v514, %v511
    %v776 = vpack.c.b16 %v515, %v512
    %v777 = vpack.c.b16 %v519, %v516
    %v778 = vpack.c.b16 %v520, %v517
    %v779 = vpack.c.b16 %v521, %v518
    %v780 = vpack.c.b16 %v525, %v522
    %v781 = vpack.c.b16 %v526, %v523
    %v782 = vpack.c.b16 %v527, %v524
    %v783 = vpack.c.b16 %v531, %v528
    %v784 = vpack.c.b16 %v532, %v529
    %v785 = vpack.c.b16 %v533, %v530
    %v786 = vpack.c.b16 %v537, %v534
    %v787 = vpack.c.b16 %v538, %v535
    %v788 = vpack.c.b16 %v539, %v536
    %v789 = vpack.c.b16 %v543, %v540
    %v790 = vpack.c.b16 %v544, %v541
    %v791 = vpack.c.b16 %v545, %v542
    %v792 = vpack.c.b16 %v549, %v546
    %v793 = vpack.c.b16 %v550, %v547
    %v794 = vpack.c.b16 %v551, %v548
    %v795 = vpack.c.b16 %v555, %v552
    %v796 = vpack.c.b16 %v556, %v553
    %v797 = vpack.c.b16 %v557, %v554
    %v798 = vpack.c.b16 %v561, %v558
    %v799 = vpack.c.b16 %v562, %v559
    %v800 = vpack.c.b16 %v563, %v560
    %v801 = vpack.c.b16 %v567, %v564
    %v802 = vpack.c.b16 %v568, %v565
    %v803 = vpack.c.b16 %v569, %v566
    %v804 = vpack.c.b16 %v573, %v570
    %v805 = vpack.c.b16 %v574, %v571
    %v806 = vpack.c.b16 %v575, %v572
    %v807 = vpack.c.b16 %v579, %v576
    %v808 = vpack.c.b16 %v580, %v577
    %v809 = vpack.c.b16 %v581, %v578
    %v810 = vpack.c.b16 %v585, %v582
    %v811 = vpack.c.b16 %v586, %v583
    %v812 = vpack.c.b16 %v587, %v584
    %v813 = vpack.c.b16 %v591, %v588
    %v814 = vpack.c.b16 %v592, %v589
    %v815 = vpack.c.b16 %v593, %v590
    %v816 = vpack.c.b16 %v597, %v594
    %v817 = vpack.c.b16 %v598, %v595
    %v818 = vpack.c.b16 %v599, %v596
    %v819 = vpack.c.b16 %v603, %v600
    %v820 = vpack.c.b16 %v604, %v601
    %v821 = vpack.c.b16 %v605, %v602
    %v822 = vpack.c.b16 %v609, %v606
    %v823 = vpack.c.b16 %v610, %v607
    %v824 = vpack.c.b16 %v611, %v608
    %v825 = vpack.c.b16 %v615, %v612
    %v826 = vpack.c.b16 %v616, %v613
    %v827 = vpack.c.b16 %v617, %v614
    %v828 = vpack.c.b16 %v621, %v618
    %v829 = vpack.c.b16 %v622, %v619
    %v830 = vpack.c.b16 %v623, %v620
    %v831 = vpack.c.b16 %v627, %v624
    %v832 = vpack.c.b16 %v628, %v625
    %v833 = vpack.c.b16 %v629, %v626
    %v834 = vpack.c.b16 %v633, %v630
    %v835 = vpack.c.b16 %v634, %v631
    %v836 = vpack.c.b16 %v635, %v632
    %v837 = vpack.c.b16 %v639, %v636
    %v838 = vpack.c.b16 %v640, %v637
    %v839 = vpack.c.b16 %v641, %v638
    %v840 = vpack.c.b16 %v645, %v642
    %v841 = vpack.c.b16 %v646, %v643
    %v842 = vpack.c.b16 %v647, %v644
    %v843 = vpack.c.b16 %v651, %v648
    %v844 = vpack.c.b16 %v652, %v649
    %v845 = vpack.c.b16 %v653, %v650
    %v846 = vpack.c.b16 %v657, %v654
    %v847 = vpack.c.b16 %v658, %v655
    %v848 = vpack.c.b16 %v659, %v656
    %v849 = vpack.c.b16 %v663, %v660
    %v850 = vpack.c.b16 %v664, %v661
    %v851 = vpack.c.b16 %v665, %v662
    %v852 = vpack.c.b16 %v669, %v666
    %v853 = vpack.c.b16 %v670, %v667
    %v854 = vpack.c.b16 %v671, %v668
    %v855 = vpack.c.b16 %v675, %v672
    %v856 = vpack.c.b16 %v676, %v673
    %v857 = vpack.c.b16 %v677, %v674
    %v858 = vpack.c.b16 %v681, %v678
    %v859 = vpack.c.b16 %v682, %v679
    %v860 = vpack.c.b16 %v683, %v680
    %v861 = vpack.c.b16 %v687, %v684
    %v862 = vpack.c.b16 %v688, %v685
    %v863 = vpack.c.b16 %v689, %v686
    %v864 = vpack.c.b16 %v693, %v690
    %v865 = vpack.c.b16 %v694, %v691
    %v866 = vpack.c.b16 %v695, %v692
    %v867 = vpack.c.b16 %v699, %v696
    %v868 = vpack.c.b16 %v700, %v697
    %v869 = vpack.c.b16 %v701, %v698
    %v870 = vpack.c.b16 %v705, %v702
    %v871 = vpack.c.b16 %v706, %v703
    %v872 = vpack.c.b16 %v707, %v704
    %v873 = vpack.c.b16 %v711, %v708
    %v874 = vpack.c.b16 %v712, %v709
    %v875 = vpack.c.b16 %v713, %v710
    %v876 = vpack.c.b16 %v717, %v714
    %v877 = vpack.c.b16 %v718, %v715
    %v878 = vpack.c.b16 %v719, %v716
    %v879 = vpack.c.b16 %v723, %v720
    %v880 = vpack.c.b16 %v724, %v721
    %v881 = vpack.c.b16 %v725, %v722
    %v882 = vpack.c.b16 %v729, %v726
    %v883 = vpack.c.b16 %v730, %v727
    %v884 = vpack.c.b16 %v731, %v728
    %v885 = vpack.c.b16 %v735, %v732
    %v886 = vpack.c.b16 %v736, %v733
    %v887 = vpack.c.b16 %v737, %v734
    %v888 = vpack.c.b16 %v741, %v738
    %v889 = vpack.c.b16 %v742, %v739
    %v890 = vpack.c.b16 %v743, %v740
    %v891 = vpack.c.b16 %v747, %v744
    %v892 = vpack.c.b16 %v748, %v745
    %v893 = vpack.c.b16 %v749, %v746
    %1038 = vmatprep.subr.bf16.mxu0 %v751
    %1039 = vmatpush1.bf16.msra.mxu0 %v750
    %1040 = vmatprep.subr.bf16.mxu0 %v754
    %1041 = vmatpush1.bf16.msra.mxu0 %v753
    %1042 = vmatprep.subr.bf16.mxu0 %v757
    %1043 = vmatpush1.bf16.msra.mxu0 %v756
    %1044 = vmatprep.subr.bf16.mxu0 %v760
    %1045 = vmatpush1.bf16.msra.mxu0 %v759
    %1046 = vmatprep.subr.bf16.mxu0 %v763
    %1047 = vmatpush1.bf16.msra.mxu0 %v762
    %1048 = vmatprep.subr.bf16.mxu0 %v766
    %1049 = vmatpush1.bf16.msra.mxu0 %v765
    %1050 = vmatprep.subr.bf16.mxu0 %v769
    %1051 = vmatpush1.bf16.msra.mxu0 %v768
    %1052 = vmatprep.subr.bf16.mxu0 %v772
    %1053 = vmatpush1.bf16.msra.mxu0 %v771
    %1054 = vmatprep.subr.bf16.mxu0 %v775
    %1055 = vmatpush1.bf16.msra.mxu0 %v774
    %1056 = vmatprep.subr.bf16.mxu0 %v778
    %1057 = vmatpush1.bf16.msra.mxu0 %v777
    %1058 = vmatprep.subr.bf16.mxu0 %v781
    %1059 = vmatpush1.bf16.msra.mxu0 %v780
    %1060 = vmatprep.subr.bf16.mxu0 %v784
    %1061 = vmatpush1.bf16.msra.mxu0 %v783
    %1062 = vmatprep.subr.bf16.mxu0 %v787
    %1063 = vmatpush1.bf16.msra.mxu0 %v786
    %1064 = vmatprep.subr.bf16.mxu0 %v790
    %1065 = vmatpush1.bf16.msra.mxu0 %v789
    %1066 = vmatprep.subr.bf16.mxu0 %v793
    %1067 = vmatpush1.bf16.msra.mxu0 %v792
    %1068 = vmatprep.subr.bf16.mxu0 %v796
    %1069 = vmatpush1.bf16.msra.mxu0 %v795
    %1070 = vmatprep.mubr.bf16.mxu0 %v259
    %1071 = vmatmul.mubr.bf16.gmra.mrb[0].mxu0 %v258
    %v1072 = vpop.f32.mrb[0].mxu0
    %v1073 = vadd.f32 0.0, %v1072
    %v1074 = vpop.f32.mrb[0].mxu0
    %v1075 = vadd.f32 0.0, %v1074
    %v1076 = vpop.f32.mrb[0].mxu0
    %v1077 = vadd.f32 0.0, %v1076
    %v1078 = vpop.f32.mrb[0].mxu0
    %v1079 = vadd.f32 0.0, %v1078
    %1080 = vdwg.mxu0
    %1081 = vmatprep.subr.bf16.mxu0 %v799
    %1082 = vmatpush1.bf16.msra.mxu0 %v798
    %1083 = vmatprep.subr.bf16.mxu0 %v802
    %1084 = vmatpush1.bf16.msra.mxu0 %v801
    %1085 = vmatprep.subr.bf16.mxu0 %v805
    %1086 = vmatpush1.bf16.msra.mxu0 %v804
    %1087 = vmatprep.subr.bf16.mxu0 %v808
    %1088 = vmatpush1.bf16.msra.mxu0 %v807
    %1089 = vmatprep.subr.bf16.mxu0 %v811
    %1090 = vmatpush1.bf16.msra.mxu0 %v810
    %1091 = vmatprep.subr.bf16.mxu0 %v814
    %1092 = vmatpush1.bf16.msra.mxu0 %v813
    %1093 = vmatprep.subr.bf16.mxu0 %v817
    %1094 = vmatpush1.bf16.msra.mxu0 %v816
    %1095 = vmatprep.subr.bf16.mxu0 %v820
    %1096 = vmatpush1.bf16.msra.mxu0 %v819
    %1097 = vmatprep.subr.bf16.mxu0 %v823
    %1098 = vmatpush1.bf16.msra.mxu0 %v822
    %1099 = vmatprep.subr.bf16.mxu0 %v826
    %1100 = vmatpush1.bf16.msra.mxu0 %v825
    %1101 = vmatprep.subr.bf16.mxu0 %v829
    %1102 = vmatpush1.bf16.msra.mxu0 %v828
    %1103 = vmatprep.subr.bf16.mxu0 %v832
    %1104 = vmatpush1.bf16.msra.mxu0 %v831
    %1105 = vmatprep.subr.bf16.mxu0 %v835
    %1106 = vmatpush1.bf16.msra.mxu0 %v834
    %1107 = vmatprep.subr.bf16.mxu0 %v838
    %1108 = vmatpush1.bf16.msra.mxu0 %v837
    %1109 = vmatprep.subr.bf16.mxu0 %v841
    %1110 = vmatpush1.bf16.msra.mxu0 %v840
    %1111 = vmatprep.subr.bf16.mxu0 %v844
    %1112 = vmatpush1.bf16.msra.mxu0 %v843
    %1113 = vmatprep.mubr.bf16.mxu0 %v261
    %1114 = vmatmul.mubr.bf16.gmra.mrb[0].mxu0 %v260
    %v1115 = vpop.f32.mrb[0].mxu0
    %v1116 = vadd.f32 %v1073, %v1115
    %v1117 = vpop.f32.mrb[0].mxu0
    %v1118 = vadd.f32 %v1075, %v1117
    %v1119 = vpop.f32.mrb[0].mxu0
    %v1120 = vadd.f32 %v1077, %v1119
    %v1121 = vpop.f32.mrb[0].mxu0
    %v1122 = vadd.f32 %v1079, %v1121
    %1123 = vdwg.mxu0
    %1124 = vmatprep.subr.bf16.mxu0 %v847
    %1125 = vmatpush1.bf16.msra.mxu0 %v846
    %1126 = vmatprep.subr.bf16.mxu0 %v850
    %1127 = vmatpush1.bf16.msra.mxu0 %v849
    %1128 = vmatprep.subr.bf16.mxu0 %v853
    %1129 = vmatpush1.bf16.msra.mxu0 %v852
    %1130 = vmatprep.subr.bf16.mxu0 %v856
    %1131 = vmatpush1.bf16.msra.mxu0 %v855
    %1132 = vmatprep.subr.bf16.mxu0 %v859
    %1133 = vmatpush1.bf16.msra.mxu0 %v858
    %1134 = vmatprep.subr.bf16.mxu0 %v862
    %1135 = vmatpush1.bf16.msra.mxu0 %v861
    %1136 = vmatprep.subr.bf16.mxu0 %v865
    %1137 = vmatpush1.bf16.msra.mxu0 %v864
    %1138 = vmatprep.subr.bf16.mxu0 %v868
    %1139 = vmatpush1.bf16.msra.mxu0 %v867
    %1140 = vmatprep.subr.bf16.mxu0 %v871
    %1141 = vmatpush1.bf16.msra.mxu0 %v870
    %1142 = vmatprep.subr.bf16.mxu0 %v874
    %1143 = vmatpush1.bf16.msra.mxu0 %v873
    %1144 = vmatprep.subr.bf16.mxu0 %v877
    %1145 = vmatpush1.bf16.msra.mxu0 %v876
    %1146 = vmatprep.subr.bf16.mxu0 %v880
    %1147 = vmatpush1.bf16.msra.mxu0 %v879
    %1148 = vmatprep.subr.bf16.mxu0 %v883
    %1149 = vmatpush1.bf16.msra.mxu0 %v882
    %1150 = vmatprep.subr.bf16.mxu0 %v886
    %1151 = vmatpush1.bf16.msra.mxu0 %v885
    %1152 = vmatprep.subr.bf16.mxu0 %v889
    %1153 = vmatpush1.bf16.msra.mxu0 %v888
    %1154 = vmatprep.subr.bf16.mxu0 %v892
    %1155 = vmatpush1.bf16.msra.mxu0 %v891
    %1156 = vmatprep.mubr.bf16.mxu0 %v263
    %1157 = vmatmul.mubr.bf16.gmra.mrb[0].mxu0 %v262
    %v1158 = vpop.f32.mrb[0].mxu0
    %v1159 = vadd.f32 %v1116, %v1158
    %v1160 = vpop.f32.mrb[0].mxu0
    %v1161 = vadd.f32 %v1118, %v1160
    %v1162 = vpop.f32.mrb[0].mxu0
    %v1163 = vadd.f32 %v1120, %v1162
    %v1164 = vpop.f32.mrb[0].mxu0
    %v1165 = vadd.f32 %v1122, %v1164
    %1166 = vdwg.mxu0
    %1167 = vmatprep.subr.bf16.mxu0 0
    %1168 = vmatpush1.bf16.msra.mxu0 %v752
    %1169 = vmatprep.subr.bf16.mxu0 0
    %1170 = vmatpush1.bf16.msra.mxu0 %v755
    %1171 = vmatprep.subr.bf16.mxu0 0
    %1172 = vmatpush1.bf16.msra.mxu0 %v758
    %1173 = vmatprep.subr.bf16.mxu0 0
    %1174 = vmatpush1.bf16.msra.mxu0 %v761
    %1175 = vmatprep.subr.bf16.mxu0 0
    %1176 = vmatpush1.bf16.msra.mxu0 %v764
    %1177 = vmatprep.subr.bf16.mxu0 0
    %1178 = vmatpush1.bf16.msra.mxu0 %v767
    %1179 = vmatprep.subr.bf16.mxu0 0
    %1180 = vmatpush1.bf16.msra.mxu0 %v770
    %1181 = vmatprep.subr.bf16.mxu0 0
    %1182 = vmatpush1.bf16.msra.mxu0 %v773
    %1183 = vmatprep.subr.bf16.mxu0 0
    %1184 = vmatpush1.bf16.msra.mxu0 %v776
    %1185 = vmatprep.subr.bf16.mxu0 0
    %1186 = vmatpush1.bf16.msra.mxu0 %v779
    %1187 = vmatprep.subr.bf16.mxu0 0
    %1188 = vmatpush1.bf16.msra.mxu0 %v782
    %1189 = vmatprep.subr.bf16.mxu0 0
    %1190 = vmatpush1.bf16.msra.mxu0 %v785
    %1191 = vmatprep.subr.bf16.mxu0 0
    %1192 = vmatpush1.bf16.msra.mxu0 %v788
    %1193 = vmatprep.subr.bf16.mxu0 0
    %1194 = vmatpush1.bf16.msra.mxu0 %v791
    %1195 = vmatprep.subr.bf16.mxu0 0
    %1196 = vmatpush1.bf16.msra.mxu0 %v794
    %1197 = vmatprep.subr.bf16.mxu0 0
    %1198 = vmatpush1.bf16.msra.mxu0 %v797
    %1199 = vmatprep.mubr.bf16.mxu0 %v259
    %1200 = vmatmul.mubr.bf16.gmra.mrb[0].mxu0 %v258
    %v1201 = vpop.f32.mrb[0].mxu0
    %v1202 = vadd.f32 0.0, %v1201
    %v1203 = vpop.f32.mrb[0].mxu0
    %v1204 = vpop.f32.mrb[0].mxu0
    %v1205 = vadd.f32 0.0, %v1204
    %v1206 = vpop.f32.mrb[0].mxu0
    %1207 = vdwg.mxu0
    %1208 = vmatprep.subr.bf16.mxu0 0
    %1209 = vmatpush1.bf16.msra.mxu0 %v800
    %1210 = vmatprep.subr.bf16.mxu0 0
    %1211 = vmatpush1.bf16.msra.mxu0 %v803
    %1212 = vmatprep.subr.bf16.mxu0 0
    %1213 = vmatpush1.bf16.msra.mxu0 %v806
    %1214 = vmatprep.subr.bf16.mxu0 0
    %1215 = vmatpush1.bf16.msra.mxu0 %v809
    %1216 = vmatprep.subr.bf16.mxu0 0
    %1217 = vmatpush1.bf16.msra.mxu0 %v812
    %1218 = vmatprep.subr.bf16.mxu0 0
    %1219 = vmatpush1.bf16.msra.mxu0 %v815
    %1220 = vmatprep.subr.bf16.mxu0 0
    %1221 = vmatpush1.bf16.msra.mxu0 %v818
    %1222 = vmatprep.subr.bf16.mxu0 0
    %1223 = vmatpush1.bf16.msra.mxu0 %v821
    %1224 = vmatprep.subr.bf16.mxu0 0
    %1225 = vmatpush1.bf16.msra.mxu0 %v824
    %1226 = vmatprep.subr.bf16.mxu0 0
    %1227 = vmatpush1.bf16.msra.mxu0 %v827
    %1228 = vmatprep.subr.bf16.mxu0 0
    %1229 = vmatpush1.bf16.msra.mxu0 %v830
    %1230 = vmatprep.subr.bf16.mxu0 0
    %1231 = vmatpush1.bf16.msra.mxu0 %v833
    %1232 = vmatprep.subr.bf16.mxu0 0
    %1233 = vmatpush1.bf16.msra.mxu0 %v836
    %1234 = vmatprep.subr.bf16.mxu0 0
    %1235 = vmatpush1.bf16.msra.mxu0 %v839
    %1236 = vmatprep.subr.bf16.mxu0 0
    %1237 = vmatpush1.bf16.msra.mxu0 %v842
    %1238 = vmatprep.subr.bf16.mxu0 0
    %1239 = vmatpush1.bf16.msra.mxu0 %v845
    %1240 = vmatprep.mubr.bf16.mxu0 %v261
    %1241 = vmatmul.mubr.bf16.gmra.mrb[0].mxu0 %v260
    %v1242 = vpop.f32.mrb[0].mxu0
    %v1243 = vadd.f32 %v1202, %v1242
    %v1244 = vpop.f32.mrb[0].mxu0
    %v1245 = vpop.f32.mrb[0].mxu0
    %v1246 = vadd.f32 %v1205, %v1245
    %v1247 = vpop.f32.mrb[0].mxu0
    %1248 = vdwg.mxu0
    %1249 = vmatprep.subr.bf16.mxu0 0
    %1250 = vmatpush1.bf16.msra.mxu0 %v848
    %1251 = vmatprep.subr.bf16.mxu0 0
    %1252 = vmatpush1.bf16.msra.mxu0 %v851
    %1253 = vmatprep.subr.bf16.mxu0 0
    %1254 = vmatpush1.bf16.msra.mxu0 %v854
    %1255 = vmatprep.subr.bf16.mxu0 0
    %1256 = vmatpush1.bf16.msra.mxu0 %v857
    %1257 = vmatprep.subr.bf16.mxu0 0
    %1258 = vmatpush1.bf16.msra.mxu0 %v860
    %1259 = vmatprep.subr.bf16.mxu0 0
    %1260 = vmatpush1.bf16.msra.mxu0 %v863
    %1261 = vmatprep.subr.bf16.mxu0 0
    %1262 = vmatpush1.bf16.msra.mxu0 %v866
    %1263 = vmatprep.subr.bf16.mxu0 0
    %1264 = vmatpush1.bf16.msra.mxu0 %v869
    %1265 = vmatprep.subr.bf16.mxu0 0
    %1266 = vmatpush1.bf16.msra.mxu0 %v872
    %1267 = vmatprep.subr.bf16.mxu0 0
    %1268 = vmatpush1.bf16.msra.mxu0 %v875
    %1269 = vmatprep.subr.bf16.mxu0 0
    %1270 = vmatpush1.bf16.msra.mxu0 %v878
    %1271 = vmatprep.subr.bf16.mxu0 0
    %1272 = vmatpush1.bf16.msra.mxu0 %v881
    %1273 = vmatprep.subr.bf16.mxu0 0
    %1274 = vmatpush1.bf16.msra.mxu0 %v884
    %1275 = vmatprep.subr.bf16.mxu0 0
    %1276 = vmatpush1.bf16.msra.mxu0 %v887
    %1277 = vmatprep.subr.bf16.mxu0 0
    %1278 = vmatpush1.bf16.msra.mxu0 %v890
    %1279 = vmatprep.subr.bf16.mxu0 0
    %1280 = vmatpush1.bf16.msra.mxu0 %v893
    %1281 = vmatprep.mubr.bf16.mxu0 %v263
    %1282 = vmatmul.mubr.bf16.gmra.mrb[0].mxu0 %v262
    %v1283 = vpop.f32.mrb[0].mxu0
    %v1284 = vadd.f32 %v1243, %v1283
    %v1285 = vpop.f32.mrb[0].mxu0
    %v1286 = vpop.f32.mrb[0].mxu0
    %v1287 = vadd.f32 %v1246, %v1286
    %v1288 = vpop.f32.mrb[0].mxu0
    %1289 = vdwg.mxu0
    %v1290 = vld [vmem:[%s1] sm:$0x3f]
    %v1293 = vunpack.c.l.s4 1966171168
    %v1294 = vunpack.c.0.s8 %v1293
    %v1295 = vlaneseq
    %v1296 = vshrl.u32 %v1295, 7
    %v1297 = vsub.s32 %v1294, %v1296
    %v1298 = vrot.slane %v1290, %v1297
    %v1299 = vcombine.high %v1298, %v1298
    %v1300 = vlaneseq
    %v1301 = vshrl.u32 %v1300, 7
    %v1302 = vsub.s32 0, %v1301
    %v1303 = vrot.slane %v1298, %v1302
    %v1304 = vlaneseq
    %v1305 = vshrl.u32 %v1304, 7
    %v1306 = vsub.s32 1, %v1305
    %v1307 = vrot.slane %v1298, %v1306
    %v1308 = vlaneseq
    %v1309 = vshrl.u32 %v1308, 7
    %v1310 = vsub.s32 2, %v1309
    %v1311 = vrot.slane %v1298, %v1310
    %v1312 = vlaneseq
    %v1313 = vshrl.u32 %v1312, 7
    %v1314 = vsub.s32 0, %v1313
    %v1315 = vrot.slane %v1299, %v1314
    %v1316 = vlaneseq
    %v1317 = vshrl.u32 %v1316, 7
    %v1318 = vsub.s32 1, %v1317
    %v1319 = vrot.slane %v1299, %v1318
    %v1320 = vlaneseq
    %v1321 = vshrl.u32 %v1320, 7
    %v1322 = vsub.s32 2, %v1321
    %v1323 = vrot.slane %v1299, %v1322
    %v1330 = vadd.f32 %v1159, %v1303
    %v1331 = vadd.f32 %v1161, %v1307
    %v1332 = vadd.f32 %v1284, %v1311
    %v1333 = vadd.f32 %v1163, %v1315
    %v1334 = vadd.f32 %v1165, %v1319
    %v1335 = vadd.f32 %v1287, %v1323
    %v1336 = vmax.f32 %v1330, 0.0
    %v1337 = vmax.f32 %v1331, 0.0
    %v1338 = vmax.f32 %v1332, 0.0
    %v1339 = vmax.f32 %v1333, 0.0
    %v1340 = vmax.f32 %v1334, 0.0
    %v1341 = vmax.f32 %v1335, 0.0
    %v1342 = vpack.c.bf16 %v1339, %v1336
    %v1343 = vpack.c.bf16 %v1340, %v1337
    %v1344 = vpack.c.bf16 %v1341, %v1338
    %v1345 = vld [vmem:[%s5] sm:$0xf]
    %v1346 = vld [vmem:[%s5 + $0x4] sm:$0xf]
    %v1347 = vld [vmem:[%s5 + $0x8] sm:$0xf]
    %v1348 = vld [vmem:[%s5 + $0xc] sm:$0xf]
    %v1349 = vld [vmem:[%s5 + $0x10] sm:$0xf]
    %v1350 = vld [vmem:[%s5 + $0x14] sm:$0xf]
    %v1351 = vld [vmem:[%s5 + $0x18] sm:$0xf]
    %v1352 = vld [vmem:[%s5 + $0x1c] sm:$0xf]
    %v1353 = vld [vmem:[%s5 + $0x20] sm:$0xf]
    %v1354 = vld [vmem:[%s5 + $0x24] sm:$0xf]
    %v1355 = vld [vmem:[%s5 + $0x28] sm:$0xf]
    %v1356 = vld [vmem:[%s5 + $0x2c] sm:$0xf]
    %v1357 = vld [vmem:[%s5 + $0x30] sm:$0xf]
    %v1358 = vld [vmem:[%s5 + $0x34] sm:$0xf]
    %v1359 = vld [vmem:[%s5 + $0x38] sm:$0xf]
    %v1360 = vld [vmem:[%s5 + $0x3c] sm:$0xf]
    %v1361 = vld [vmem:[%s5 + $0x40] sm:$0xf]
    %v1362 = vld [vmem:[%s5 + $0x44] sm:$0xf]
    %v1363 = vld [vmem:[%s5 + $0x48] sm:$0xf]
    %v1364 = vld [vmem:[%s5 + $0x4c] sm:$0xf]
    %v1365 = vld [vmem:[%s5 + $0x50] sm:$0xf]
    %v1366 = vld [vmem:[%s5 + $0x54] sm:$0xf]
    %v1367 = vld [vmem:[%s5 + $0x58] sm:$0xf]
    %v1368 = vld [vmem:[%s5 + $0x5c] sm:$0xf]
    %v1369 = vld [vmem:[%s5 + $0x60] sm:$0xf]
    %v1370 = vld [vmem:[%s5 + $0x64] sm:$0xf]
    %v1371 = vld [vmem:[%s5 + $0x68] sm:$0xf]
    %v1372 = vld [vmem:[%s5 + $0x6c] sm:$0xf]
    %v1373 = vld [vmem:[%s5 + $0x70] sm:$0xf]
    %v1374 = vld [vmem:[%s5 + $0x74] sm:$0xf]
    %v1375 = vld [vmem:[%s5 + $0x78] sm:$0xf]
    %v1376 = vld [vmem:[%s5 + $0x7c] sm:$0xf]
    %v1377 = vld [vmem:[%s5 + $0x80] sm:$0xf]
    %v1378 = vld [vmem:[%s5 + $0x84] sm:$0xf]
    %v1379 = vld [vmem:[%s5 + $0x88] sm:$0xf]
    %v1380 = vld [vmem:[%s5 + $0x8c] sm:$0xf]
    %v1381 = vld [vmem:[%s5 + $0x90] sm:$0xf]
    %v1382 = vld [vmem:[%s5 + $0x94] sm:$0xf]
    %v1383 = vld [vmem:[%s5 + $0x98] sm:$0xf]
    %v1384 = vld [vmem:[%s5 + $0x9c] sm:$0xf]
    %v1385 = vld [vmem:[%s5 + $0xa0] sm:$0xf]
    %v1386 = vld [vmem:[%s5 + $0xa4] sm:$0xf]
    %v1387 = vld [vmem:[%s5 + $0xa8] sm:$0xf]
    %v1388 = vld [vmem:[%s5 + $0xac] sm:$0xf]
    %v1389 = vld [vmem:[%s5 + $0xb0] sm:$0xf]
    %v1390 = vld [vmem:[%s5 + $0xb4] sm:$0xf]
    %v1391 = vld [vmem:[%s5 + $0xb8] sm:$0xf]
    %v1392 = vld [vmem:[%s5 + $0xbc] sm:$0xf]
    %v1441 = vunpack.c.l.b16 %v1345
    %v1442 = vunpack.c.l.b16 %v1346
    %v1443 = vunpack.c.l.b16 %v1347
    %v1444 = vunpack.c.l.b16 %v1348
    %v1445 = vunpack.c.l.b16 %v1349
    %v1446 = vunpack.c.l.b16 %v1350
    %v1447 = vunpack.c.l.b16 %v1351
    %v1448 = vunpack.c.l.b16 %v1352
    %v1449 = vunpack.c.l.b16 %v1353
    %v1450 = vunpack.c.l.b16 %v1354
    %v1451 = vunpack.c.l.b16 %v1355
    %v1452 = vunpack.c.l.b16 %v1356
    %v1453 = vunpack.c.l.b16 %v1357
    %v1454 = vunpack.c.l.b16 %v1358
    %v1455 = vunpack.c.l.b16 %v1359
    %v1456 = vunpack.c.l.b16 %v1360
    %v1457 = vunpack.c.l.b16 %v1361
    %v1458 = vunpack.c.l.b16 %v1362
    %v1459 = vunpack.c.l.b16 %v1363
    %v1460 = vunpack.c.l.b16 %v1364
    %v1461 = vunpack.c.l.b16 %v1365
    %v1462 = vunpack.c.l.b16 %v1366
    %v1463 = vunpack.c.l.b16 %v1367
    %v1464 = vunpack.c.l.b16 %v1368
    %v1465 = vunpack.c.l.b16 %v1369
    %v1466 = vunpack.c.l.b16 %v1370
    %v1467 = vunpack.c.l.b16 %v1371
    %v1468 = vunpack.c.l.b16 %v1372
    %v1469 = vunpack.c.l.b16 %v1373
    %v1470 = vunpack.c.l.b16 %v1374
    %v1471 = vunpack.c.l.b16 %v1375
    %v1472 = vunpack.c.l.b16 %v1376
    %v1473 = vunpack.c.l.b16 %v1377
    %v1474 = vunpack.c.l.b16 %v1378
    %v1475 = vunpack.c.l.b16 %v1379
    %v1476 = vunpack.c.l.b16 %v1380
    %v1477 = vunpack.c.l.b16 %v1381
    %v1478 = vunpack.c.l.b16 %v1382
    %v1479 = vunpack.c.l.b16 %v1383
    %v1480 = vunpack.c.l.b16 %v1384
    %v1481 = vunpack.c.l.b16 %v1385
    %v1482 = vunpack.c.l.b16 %v1386
    %v1483 = vunpack.c.l.b16 %v1387
    %v1484 = vunpack.c.l.b16 %v1388
    %v1485 = vunpack.c.l.b16 %v1389
    %v1486 = vunpack.c.l.b16 %v1390
    %v1487 = vunpack.c.l.b16 %v1391
    %v1488 = vunpack.c.l.b16 %v1392
    %v1489 = vpack.c.b16 %v1442, %v1441
    %v1490 = vpack.c.b16 %v1444, %v1443
    %v1491 = vpack.c.b16 %v1446, %v1445
    %v1492 = vpack.c.b16 %v1448, %v1447
    %v1493 = vpack.c.b16 %v1450, %v1449
    %v1494 = vpack.c.b16 %v1452, %v1451
    %v1495 = vpack.c.b16 %v1454, %v1453
    %v1496 = vpack.c.b16 %v1456, %v1455
    %v1497 = vpack.c.b16 %v1458, %v1457
    %v1498 = vpack.c.b16 %v1460, %v1459
    %v1499 = vpack.c.b16 %v1462, %v1461
    %v1500 = vpack.c.b16 %v1464, %v1463
    %v1501 = vpack.c.b16 %v1466, %v1465
    %v1502 = vpack.c.b16 %v1468, %v1467
    %v1503 = vpack.c.b16 %v1470, %v1469
    %v1504 = vpack.c.b16 %v1472, %v1471
    %v1505 = vpack.c.b16 %v1474, %v1473
    %v1506 = vpack.c.b16 %v1476, %v1475
    %v1507 = vpack.c.b16 %v1478, %v1477
    %v1508 = vpack.c.b16 %v1480, %v1479
    %v1509 = vpack.c.b16 %v1482, %v1481
    %v1510 = vpack.c.b16 %v1484, %v1483
    %v1511 = vpack.c.b16 %v1486, %v1485
    %v1512 = vpack.c.b16 %v1488, %v1487
    %1537 = vmatprep.subr.bf16.mxu0 0
    %1538 = vmatpush1.bf16.msra.mxu0 %v1489
    %1539 = vmatprep.subr.bf16.mxu0 0
    %1540 = vmatpush1.bf16.msra.mxu0 %v1490
    %1541 = vmatprep.subr.bf16.mxu0 0
    %1542 = vmatpush1.bf16.msra.mxu0 %v1491
    %1543 = vmatprep.subr.bf16.mxu0 0
    %1544 = vmatpush1.bf16.msra.mxu0 %v1492
    %1545 = vmatprep.subr.bf16.mxu0 0
    %1546 = vmatpush1.bf16.msra.mxu0 %v1493
    %1547 = vmatprep.subr.bf16.mxu0 0
    %1548 = vmatpush1.bf16.msra.mxu0 %v1494
    %1549 = vmatprep.subr.bf16.mxu0 0
    %1550 = vmatpush1.bf16.msra.mxu0 %v1495
    %1551 = vmatprep.subr.bf16.mxu0 0
    %1552 = vmatpush1.bf16.msra.mxu0 %v1496
    %1553 = vmatprep.subr.bf16.mxu0 0
    %1554 = vmatpush1.bf16.msra.mxu0 %v1497
    %1555 = vmatprep.subr.bf16.mxu0 0
    %1556 = vmatpush1.bf16.msra.mxu0 %v1498
    %1557 = vmatprep.subr.bf16.mxu0 0
    %1558 = vmatpush1.bf16.msra.mxu0 %v1499
    %1559 = vmatprep.subr.bf16.mxu0 0
    %1560 = vmatpush1.bf16.msra.mxu0 %v1500
    %1561 = vmatprep.subr.bf16.mxu0 0
    %1562 = vmatpush1.bf16.msra.mxu0 %v1501
    %1563 = vmatprep.subr.bf16.mxu0 0
    %1564 = vmatpush1.bf16.msra.mxu0 %v1502
    %1565 = vmatprep.subr.bf16.mxu0 0
    %1566 = vmatpush1.bf16.msra.mxu0 %v1503
    %1567 = vmatprep.subr.bf16.mxu0 0
    %1568 = vmatpush1.bf16.msra.mxu0 %v1504
    %1569 = vmatprep.mubr.bf16.mxu0 %v1343
    %1570 = vmatmul.mubr.bf16.gmra.mrb[0].mxu0 %v1342
    %v1571 = vpop.f32.mrb[0].mxu0
    %v1572 = vadd.f32 0.0, %v1571
    %v1573 = vpop.f32.mrb[0].mxu0
    %v1574 = vpop.f32.mrb[0].mxu0
    %v1575 = vadd.f32 0.0, %v1574
    %v1576 = vpop.f32.mrb[0].mxu0
    %1577 = vdwg.mxu0
    %1578 = vmatprep.subr.bf16.mxu0 0
    %1579 = vmatpush1.bf16.msra.mxu0 %v1505
    %1580 = vmatprep.subr.bf16.mxu0 0
    %1581 = vmatpush1.bf16.msra.mxu0 %v1506
    %1582 = vmatprep.subr.bf16.mxu0 0
    %1583 = vmatpush1.bf16.msra.mxu0 %v1507
    %1584 = vmatprep.subr.bf16.mxu0 0
    %1585 = vmatpush1.bf16.msra.mxu0 %v1508
    %1586 = vmatprep.subr.bf16.mxu0 0
    %1587 = vmatpush1.bf16.msra.mxu0 %v1509
    %1588 = vmatprep.subr.bf16.mxu0 0
    %1589 = vmatpush1.bf16.msra.mxu0 %v1510
    %1590 = vmatprep.subr.bf16.mxu0 0
    %1591 = vmatpush1.bf16.msra.mxu0 %v1511
    %1592 = vmatprep.subr.bf16.mxu0 0
    %1593 = vmatpush1.bf16.msra.mxu0 %v1512
    %1594 = vmatprep.subr.bf16.mxu0 0
    %1595 = vmatpush1.bf16.msra.mxu0 0
    %1596 = vmatprep.subr.bf16.mxu0 0
    %1597 = vmatpush1.bf16.msra.mxu0 0
    %1598 = vmatprep.subr.bf16.mxu0 0
    %1599 = vmatpush1.bf16.msra.mxu0 0
    %1600 = vmatprep.subr.bf16.mxu0 0
    %1601 = vmatpush1.bf16.msra.mxu0 0
    %1602 = vmatprep.subr.bf16.mxu0 0
    %1603 = vmatpush1.bf16.msra.mxu0 0
    %1604 = vmatprep.subr.bf16.mxu0 0
    %1605 = vmatpush1.bf16.msra.mxu0 0
    %1606 = vmatprep.subr.bf16.mxu0 0
    %1607 = vmatpush1.bf16.msra.mxu0 0
    %1608 = vmatprep.subr.bf16.mxu0 0
    %1609 = vmatpush1.bf16.msra.mxu0 0
    %1610 = vmatprep.mubr.bf16.mxu0 0
    %1611 = vmatmul.mubr.bf16.gmra.mrb[0].mxu0 %v1344
    %v1612 = vpop.f32.mrb[0].mxu0
    %v1613 = vadd.f32 %v1572, %v1612
    %v1614 = vpop.f32.mrb[0].mxu0
    %v1615 = vpop.f32.mrb[0].mxu0
    %v1616 = vadd.f32 %v1575, %v1615
    %v1617 = vpop.f32.mrb[0].mxu0
    %1618 = vdwg.mxu0
    %v1619 = vld [vmem:[%s6] sm:$0x1]
    %v1621 = vlaneseq
    %v1622 = vshrl.u32 %v1621, 7
    %v1623 = vsub.s32 0, %v1622
    %v1624 = vrot.slane %v1619, %v1623
    %v1626 = vadd.f32 %v1613, %v1624
    %v1627 = vadd.f32 %v1616, %v1624
    %v1628 = vld [vmem:[%s2] sm:$0x3]
    %v1629 = vlaneseq
    %v1630 = vshrl.u32 %v1629, 7
    %v1631 = vsub.s32 0, %v1630
    %v1632 = vrot.slane %v1628, %v1631
    %1634 = vbcast.lane.b32.xlu0 %v1632, 256
    %v1635 = vpop.permute.xlu0 %1634
    %v1636 = vlaneseq
    %v1637 = vshrl.u32 %v1636, 7
    %v1638 = vsub.s32 1, %v1637
    %v1639 = vrot.slane %v1628, %v1638
    %1641 = vbcast.lane.b32.xlu0 %v1639, 256
    %v1642 = vpop.permute.xlu0 %1641
    %v1643 = vadd.f32 %v1626, %v1635
    %v1644 = vadd.f32 %v1627, %v1642
    %vm1645 = vcmask 211968
    %v1646 = vsel %vm1645, %v1643, -inf
    %v1647 = vrot.slane %v1646, 4
    %v1648 = vmax.f32 %v1646, %v1647
    %v1649 = vrot.slane %v1648, 2
    %v1650 = vmax.f32 %v1648, %v1649
    %v1651 = vrot.slane %v1650, 1
    %v1652 = vmax.f32 %v1650, %v1651
    %v1653 = vsel %vm1645, %v1644, -inf
    %v1654 = vrot.slane %v1653, 4
    %v1655 = vmax.f32 %v1653, %v1654
    %v1656 = vrot.slane %v1655, 2
    %v1657 = vmax.f32 %v1655, %v1656
    %v1658 = vrot.slane %v1657, 1
    %v1659 = vmax.f32 %v1657, %v1658
    %vm1660 = vcmask 58368
    %v1661 = vsel %vm1660, %v1628, -inf
    %1662 = vmax.xlane.f32.xlu0 %v1661
    %v1663 = vpop.xlane.xlu0 %1662
    %v1664 = vld [vmem:[%s3] sm:$0x3]
    %vm1665 = vcmp.ge.f32.partialorder %v1664, 0.5
    %v1666 = vadd.f32 %v1663, -1e+09
    %vm1669 = vcmask 1041409
    %v1670 = vsel %vm1669, %v1659, %v1652
    %v1672 = vsel %vm1665, %v1666, %v1670
    %vm1673 = vcmask 205824
    %1674 = vst.msk [vmem:[#allocation5] sm:$0x3] %vm1673, %v1672
    // Predicated region
    $region34: #{tpu_custom_call.1} parent=1 // pred_check
      _
    $region35: #{tpu_custom_call.1} parent=1 // pred_check_branch
      %1676 = sbr.rel (0) target = $region37
    $region36: #{tpu_custom_call.1} parent=1 // pred_region
      %s1678 = ssub.s32 32, 32
      %1679 = vsyncadd [#allocation4], %s1678
      %s1681 = sshll.u32 [#allocation5], 4
      %s1682 = int_to_ptr.vmem [resolvable:$true] %s1681
      %1684 = dma.vmem_to_hbm [thread:$0]  %s1682, 32, %s7, [#allocation4]
    $region37: #{tpu_custom_call.1} parent=1 // pred_fallthru
      _
    // Predicated region
    $region38: #{tpu_custom_call.1} parent=1 // pred_check
      _
    $region39: #{tpu_custom_call.1} parent=1 // pred_check_branch
      %1686 = sbr.rel (0) target = $region41
    $region40: #{tpu_custom_call.1} parent=1 // pred_region
      %1687 = dma.done [#allocation4], 32
    $region41: #{tpu_custom_call.1} parent=1 // pred_fallthru
      _
    %1688 = vsyncpa [#allocation3], 1
    %1689 = vsyncpa [#allocation4], 1

</llo_original>
